<compile_context>
chip_gen: v6e
topology: v6e:2x2x1
jax: 0.10.0
libtpu: 0.0.40
codegen_flags: <defaults>
</compile_context>

<pallas_src>
import functools

import jax
import jax.numpy as jnp
from jax.experimental import pallas as pl
from jax.experimental.pallas import tpu as pltpu

LANE = 128       # TPU lane width
OUT_LANES = 8    # padded width of the Q-value output slab
MAX_TB = 1024    # batch tile for large batches


def _round_up(x, m):
    return ((x + m - 1) // m) * m


def make_mlp_kernel(in_size):
    """Kernel specialized to this network (hidden sizes <= 128, <= 8 actions)."""

    def mlp_kernel(x_ref, w_ref, aux_ref, o_ref):
        x = x_ref[...]                                        # [TB, in_size] f32

        # ---- Layer 1 on the VPU: K=in_size (=3) is far too small for the MXU.
        #      W1 lives in the f32 aux slab (rows 3..3+in_size) -> full precision.
        h = x[:, 0:1] * aux_ref[3:4, :]                       # [TB, 128] f32
        for k in range(1, in_size):                           # unrolled at trace time
            h = h + x[:, k:k + 1] * aux_ref[3 + k:4 + k, :]
        h = jnp.maximum(h + aux_ref[0:1, :], 0.0)             # + b1, ReLU (f32)

        # ---- Layer 2 on the MXU: bf16 operands, f32 accumulate, f32 epilogue.
        h = jnp.dot(h.astype(jnp.bfloat16),
                    w_ref[0:LANE, :],
                    preferred_element_type=jnp.float32)       # [TB, 128]
        h = jnp.maximum(h + aux_ref[1:2, :], 0.0)             # + b2, ReLU (f32)

        # ---- Output layer on the MXU; only the first OUT_LANES lanes are stored.
        out = jnp.dot(h.astype(jnp.bfloat16),
                      w_ref[LANE:2 * LANE, :],
                      preferred_element_type=jnp.float32)     # [TB, 128]
        out = out + aux_ref[2:3, :]                           # + b3 (f32)
        o_ref[...] = out[:, 0:OUT_LANES].astype(o_ref.dtype)  # masked 8-lane store

    return mlp_kernel


def pack_params(params, in_size, hidden0, hidden1, out_size):
    """Pack (w,b) pairs into one bf16 weight slab + one f32 aux (bias+W1) slab."""
    assert hidden0 <= LANE and hidden1 <= LANE and out_size <= OUT_LANES
    assert 3 + in_size <= 8, "aux slab holds W1 in rows 3..7"
    (w1, b1), (w2, b2), (w3, b3) = params

    w_slab = jnp.zeros((2 * LANE, LANE), jnp.bfloat16)
    w_slab = w_slab.at[0:hidden0, 0:hidden1].set(w2.astype(jnp.bfloat16))
    w_slab = w_slab.at[LANE:LANE + hidden1, 0:out_size].set(w3.astype(jnp.bfloat16))

    aux = jnp.zeros((8, LANE), jnp.float32)
    aux = aux.at[0, 0:hidden0].set(b1.reshape(-1))
    aux = aux.at[1, 0:hidden1].set(b2.reshape(-1))
    aux = aux.at[2, 0:out_size].set(b3.reshape(-1))
    aux = aux.at[3:3 + in_size, 0:hidden0].set(w1)            # W1 stays f32
    return w_slab, aux


def _choose_tile(batch):
    """Single step for small batches (v5e/v6e: no serial overhead); 1024-row
    tiles (grid >= 2 -> both v7x TensorCores) for large batches."""
    if batch <= MAX_TB:
        return _round_up(batch, 8)
    return MAX_TB


@functools.partial(jax.jit, static_argnames=("in_size", "out_size"))
def mlp_q_network(x, w_slab, aux_slab, *, in_size, out_size):
    """Pallas forward pass. x: [B, in_size] f32 -> [B, out_size] f32."""
    B = x.shape[0]
    tb = _choose_tile(B)
    bp = _round_up(B, tb)
    if bp != B:
        # Fused into the pallas_call input via allow_input_fusion below.
        x = jnp.pad(x, ((0, bp - B), (0, 0)))
    grid = (bp // tb,)

    # Reflects the padded 128x128 contractions the kernel actually runs.
    cost = pl.CostEstimate(
        flops=2 * bp * (in_size * LANE + LANE * LANE + LANE * LANE),
        transcendentals=0,
        bytes_accessed=(bp * in_size * 4 + w_slab.size * 2 + aux_slab.size * 4
                        + bp * OUT_LANES * 4),
    )

    out = pl.pallas_call(
        make_mlp_kernel(in_size),
        out_shape=jax.ShapeDtypeStruct((bp, OUT_LANES), jnp.float32),
        grid=grid,
        in_specs=[
            pl.BlockSpec((tb, in_size), lambda i: (i, 0)),        # stream x tiles
            pl.BlockSpec(w_slab.shape, lambda i: (0, 0)),         # resident weights
            pl.BlockSpec(aux_slab.shape, lambda i: (0, 0)),       # resident biases+W1
        ],
        out_specs=pl.BlockSpec((tb, OUT_LANES), lambda i: (i, 0)),  # 8-lane output
        compiler_params=pltpu.CompilerParams(
            dimension_semantics=("parallel",),                    # 2 TCs on v7x
            allow_input_fusion=[True, False, False]),             # fuse the pad
        cost_estimate=cost,
    )(x, w_slab, aux_slab)

    return out[:B, :out_size]


def init_params(key, input_size, hidden_sizes, output_size):
    """Deterministic init mimicking nn.Linear's uniform(-1/sqrt(fan_in), +)."""
    sizes = [input_size] + list(hidden_sizes) + [output_size]
    params = []
    for i in range(len(sizes) - 1):
        fan_in, fan_out = sizes[i], sizes[i + 1]
        key, kw, kb = jax.random.split(key, 3)
        bound = 1.0 / jnp.sqrt(float(fan_in))
        # Stored as [in, out] (transposed vs. PyTorch's [out, in]).
        w = jax.random.uniform(kw, (fan_in, fan_out), jnp.float32, -bound, bound)
        b = jax.random.uniform(kb, (1, fan_out), jnp.float32, -bound, bound)
        params.append((w, b))
    return params


def reference_forward(x, params):
    h = x
    for i, (w, b) in enumerate(params):
        h = h @ w + b
        if i < len(params) - 1:
            h = jnp.maximum(h, 0.0)
    return h


if __name__ == "__main__":
    # Blackjack-like config: 3 input features (player sum, dealer card,
    # usable ace), hidden [128, 64], 2 actions (hit / stand).
    input_size = 3
    hidden_sizes = [128, 64]
    output_size = 2
    batch = 300   # not a multiple of 8 on purpose, to exercise the padding path

    key = jax.random.PRNGKey(0)
    key, kx = jax.random.split(key)
    x = jax.random.normal(kx, (batch, input_size), dtype=jnp.float32)

    params = init_params(key, input_size, hidden_sizes, output_size)
    w_slab, aux_slab = pack_params(
        params, input_size, hidden_sizes[0], hidden_sizes[1], output_size)

    q_values = mlp_q_network(x, w_slab, aux_slab,
                             in_size=input_size, out_size=output_size)
    q_values = jax.block_until_ready(q_values)

    q_ref = reference_forward(x, params)
    assert q_values.shape == (batch, output_size)
    # bf16 matmul operands (W2/W3) -> loosen tolerance vs. the pure-f32 reference.
    assert jnp.allclose(q_values, q_ref, atol=3e-2, rtol=3e-2), (
        "Pallas output does not match reference")
    # Greedy-action agreement wherever the reference Q-gap exceeds bf16 noise.
    gap = jnp.abs(q_ref[:, 0] - q_ref[:, 1])
    same_action = jnp.argmax(q_values, axis=-1) == jnp.argmax(q_ref, axis=-1)
    assert bool(jnp.all(same_action | (gap <= 5e-2))), (
        "Greedy action disagrees with f32 reference on a decisive state")

    print("KERNEL_OK")
</pallas_src>

<mosaic_0001>
module attributes {stable_mosaic.version = 11 : i64} {
  func.func @mlp_kernel(%arg0: i32, %arg1: memref<304x3xf32, #tpu.memory_space<vmem>>, %arg2: memref<256x128xbf16, #tpu.memory_space<vmem>>, %arg3: memref<8x128xf32, #tpu.memory_space<vmem>>, %arg4: memref<304x8xf32, #tpu.memory_space<vmem>>) attributes {dimension_semantics = [#tpu.dimension_semantics<parallel>], iteration_bounds = array<i64: 1>, scalar_prefetch = 0 : i64, scratch_operands = 0 : i64, tpu.core_type = #tpu.core_type<tc>, window_params = [{transform_indices = @transform_0, window_bounds = array<i64: 304, 3>}, {pipeline_mode = #tpu.pipeline_mode<synchronous>, transform_indices = @transform_1, window_bounds = array<i64: 256, 128>}, {pipeline_mode = #tpu.pipeline_mode<synchronous>, transform_indices = @transform_2, window_bounds = array<i64: 8, 128>}, {transform_indices = @transform_3, window_bounds = array<i64: 304, 8>}]} {
    %c0 = arith.constant 0 : index
    %c0_0 = arith.constant 0 : index
    %0 = vector.load %arg1[%c0, %c0_0] : memref<304x3xf32, #tpu.memory_space<vmem>>, vector<304x3xf32>
    %1 = vector.extract_strided_slice %0 {offsets = [0, 0], sizes = [304, 1], strides = [1, 1]} : vector<304x3xf32> to vector<304x1xf32>
    %c3 = arith.constant 3 : index
    %c0_1 = arith.constant 0 : index
    %2 = vector.load %arg3[%c3, %c0_1] : memref<8x128xf32, #tpu.memory_space<vmem>>, vector<1x128xf32>
    %3 = vector.broadcast %1 : vector<304x1xf32> to vector<304x128xf32>
    %4 = vector.broadcast %2 : vector<1x128xf32> to vector<304x128xf32>
    %5 = arith.mulf %3, %4 : vector<304x128xf32>
    %6 = vector.extract_strided_slice %0 {offsets = [0, 1], sizes = [304, 1], strides = [1, 1]} : vector<304x3xf32> to vector<304x1xf32>
    %c4 = arith.constant 4 : index
    %c0_2 = arith.constant 0 : index
    %7 = vector.load %arg3[%c4, %c0_2] : memref<8x128xf32, #tpu.memory_space<vmem>>, vector<1x128xf32>
    %8 = vector.broadcast %6 : vector<304x1xf32> to vector<304x128xf32>
    %9 = vector.broadcast %7 : vector<1x128xf32> to vector<304x128xf32>
    %10 = arith.mulf %8, %9 : vector<304x128xf32>
    %11 = arith.addf %5, %10 : vector<304x128xf32>
    %12 = vector.extract_strided_slice %0 {offsets = [0, 2], sizes = [304, 1], strides = [1, 1]} : vector<304x3xf32> to vector<304x1xf32>
    %c5 = arith.constant 5 : index
    %c0_3 = arith.constant 0 : index
    %13 = vector.load %arg3[%c5, %c0_3] : memref<8x128xf32, #tpu.memory_space<vmem>>, vector<1x128xf32>
    %14 = vector.broadcast %12 : vector<304x1xf32> to vector<304x128xf32>
    %15 = vector.broadcast %13 : vector<1x128xf32> to vector<304x128xf32>
    %16 = arith.mulf %14, %15 : vector<304x128xf32>
    %17 = arith.addf %11, %16 : vector<304x128xf32>
    %c0_4 = arith.constant 0 : index
    %c0_5 = arith.constant 0 : index
    %18 = vector.load %arg3[%c0_4, %c0_5] : memref<8x128xf32, #tpu.memory_space<vmem>>, vector<1x128xf32>
    %19 = vector.broadcast %18 : vector<1x128xf32> to vector<304x128xf32>
    %20 = arith.addf %17, %19 : vector<304x128xf32>
    %cst = arith.constant 0.000000e+00 : f32
    %21 = vector.broadcast %cst : f32 to vector<304x128xf32>
    %22 = arith.maximumf %20, %21 : vector<304x128xf32>
    %23 = arith.truncf %22 : vector<304x128xf32> to vector<304x128xbf16>
    %c0_6 = arith.constant 0 : index
    %c0_7 = arith.constant 0 : index
    %24 = vector.load %arg2[%c0_6, %c0_7] : memref<256x128xbf16, #tpu.memory_space<vmem>>, vector<128x128xbf16>
    %cst_8 = arith.constant dense<0.000000e+00> : vector<304x128xf32>
    %25 = tpu.matmul %23, %24, %cst_8 {dimension_numbers = #tpu.dot_dimension_numbers<[1], [0], [0], [1], [0, 0, 1, 1], [], []>} : vector<304x128xbf16>, vector<128x128xbf16>, vector<304x128xf32> -> vector<304x128xf32>
    %c1 = arith.constant 1 : index
    %c0_9 = arith.constant 0 : index
    %26 = vector.load %arg3[%c1, %c0_9] : memref<8x128xf32, #tpu.memory_space<vmem>>, vector<1x128xf32>
    %27 = vector.broadcast %26 : vector<1x128xf32> to vector<304x128xf32>
    %28 = arith.addf %25, %27 : vector<304x128xf32>
    %cst_10 = arith.constant 0.000000e+00 : f32
    %29 = vector.broadcast %cst_10 : f32 to vector<304x128xf32>
    %30 = arith.maximumf %28, %29 : vector<304x128xf32>
    %31 = arith.truncf %30 : vector<304x128xf32> to vector<304x128xbf16>
    %c128 = arith.constant 128 : index
    %c0_11 = arith.constant 0 : index
    %32 = vector.load %arg2[%c128, %c0_11] : memref<256x128xbf16, #tpu.memory_space<vmem>>, vector<128x128xbf16>
    %cst_12 = arith.constant dense<0.000000e+00> : vector<304x128xf32>
    %33 = tpu.matmul %31, %32, %cst_12 {dimension_numbers = #tpu.dot_dimension_numbers<[1], [0], [0], [1], [0, 0, 1, 1], [], []>} : vector<304x128xbf16>, vector<128x128xbf16>, vector<304x128xf32> -> vector<304x128xf32>
    %c2 = arith.constant 2 : index
    %c0_13 = arith.constant 0 : index
    %34 = vector.load %arg3[%c2, %c0_13] : memref<8x128xf32, #tpu.memory_space<vmem>>, vector<1x128xf32>
    %35 = vector.broadcast %34 : vector<1x128xf32> to vector<304x128xf32>
    %36 = arith.addf %33, %35 : vector<304x128xf32>
    %37 = vector.extract_strided_slice %36 {offsets = [0, 0], sizes = [304, 8], strides = [1, 1]} : vector<304x128xf32> to vector<304x8xf32>
    %c0_14 = arith.constant 0 : index
    %c0_15 = arith.constant 0 : index
    %38 = vector.load %arg4[%c0_14, %c0_15] : memref<304x8xf32, #tpu.memory_space<vmem>>, vector<304x8xf32>
    tpu.vector_store %arg4[%c0_14, %c0_15], %37 {strides = array<i32>} : memref<304x8xf32, #tpu.memory_space<vmem>>, vector<304x8xf32>,
    return
  }
  func.func @transform_0(%arg0: i32) -> (i32, i32) {
    %c0_i32 = arith.constant 0 : i32
    %c0_i32_0 = arith.constant 0 : i32
    return %arg0, %c0_i32 : i32, i32
  }
  func.func @transform_1(%arg0: i32) -> (i32, i32) {
    %c0_i32 = arith.constant 0 : i32
    %c0_i32_0 = arith.constant 0 : i32
    %c0_i32_1 = arith.constant 0 : i32
    return %c0_i32, %c0_i32_0 : i32, i32
  }
  func.func @transform_2(%arg0: i32) -> (i32, i32) {
    %c0_i32 = arith.constant 0 : i32
    %c0_i32_0 = arith.constant 0 : i32
    %c0_i32_1 = arith.constant 0 : i32
    return %c0_i32, %c0_i32_0 : i32, i32
  }
  func.func @transform_3(%arg0: i32) -> (i32, i32) {
    %c0_i32 = arith.constant 0 : i32
    %c0_i32_0 = arith.constant 0 : i32
    return %arg0, %c0_i32 : i32, i32
  }
}

</mosaic_0001>

<llo_original>
// kernel: mlp_q_network.2
$region0: #{mlp_q_network.2}
  #allocation0 [shape = 'u32[]', space=smem, size = 0x4, offset = 0x4, fixed_abs, tag = 'smem constant byte address 0x4 - core index']
  #allocation1 [shape = 'u32[144,128]{1,0:T(1,128)}', space=vmem, size = 0x12000, scoped, tag = 'internal scratch']
  #allocation2 [shape = 'u32[2048]{0}', space=vmem, size = 0x2000, scoped, tag = 'scoped memory for mlp_q_network.2']
  #allocation3 [shape = 'u32[2048]{0}', space=vmem, size = 0x2000, scoped, tag = 'scoped memory for mlp_q_network.2']
  #allocation4 [shape = 'u32[2048]{0}', space=vmem, size = 0x2000, scoped, tag = 'scoped memory for mlp_q_network.2']
  #allocation5 [shape = 'u32[2048]{0}', space=vmem, size = 0x2000, scoped, tag = 'scoped memory for mlp_q_network.2']
  #allocation6 [shape = 'u32[2048]{0}', space=vmem, size = 0x2000, scoped, tag = 'scoped memory for mlp_q_network.2']
  %s0 = inlined_call_operand.vmem [shape: bf16[256,128], index: 0, kind: input, shape index: {}]
  %s1 = inlined_call_operand.vmem [shape: f32[8,128], index: 1, kind: input, shape index: {}]
  %s2 = inlined_call_operand.vmem [shape: f32[300,3], index: 2, kind: input, shape index: {}]
  %s3 = inlined_call_operand.<no memory space> [shape: f32[], index: 3, kind: input, shape index: {}]
  %s4 = inlined_call_operand.vmem [shape: f32[304,8], index: 4, kind: output, shape index: {}]
  %s5 = sld [smem:[#allocation0]]
  $region22: #{mlp_q_network.2} parent=0
    _
  %s7 = ssub.s32 1, %s5
  %s8 = scalar_select 0, %s7, %s5
  %v9 = vstv %s3
  $region1: #{mlp_q_network.2} parent=0
    #allocation7 [shape = 'u8[155648]{0}', space=vmem, size = 0x26000, dematerialized = true, scoped, tag = 'FusionAdapter Buffer %fusion.1 = f32[304,3]{1,0:T(8,128)} fusion(%param_2.1, %param_3), kind=kLoop, calls=%fused_computation.1.clone, metadata={op_name="jit(mlp_q_network)/jit(_pad)/pad" stack_frame_id=1}']
    // Predicated region
    $region2: #{mlp_q_network.2} parent=1 // pred_check
      _
    $region3: #{mlp_q_network.2} parent=1 // pred_check_branch
      %11 = sbr.rel (0) target = $region5
    $region4: #{mlp_q_network.2} parent=1 // pred_region
      _
    $region5: #{mlp_q_network.2} parent=1 // pred_fallthru
      _
    // Predicated region
    $region6: #{mlp_q_network.2} parent=1 // pred_check
      _
    $region7: #{mlp_q_network.2} parent=1 // pred_check_branch
      %13 = sbr.rel (0) target = $region9
    $region8: #{mlp_q_network.2} parent=1 // pred_region
      _
    $region9: #{mlp_q_network.2} parent=1 // pred_fallthru
      _
    // Predicated region
    $region10: #{mlp_q_network.2} parent=1 // pred_check
      _
    $region11: #{mlp_q_network.2} parent=1 // pred_check_branch
      %15 = sbr.rel (0) target = $region13
    $region12: #{mlp_q_network.2} parent=1 // pred_region
      _
    $region13: #{mlp_q_network.2} parent=1 // pred_fallthru
      _
    %v16 = vld [vmem:[%s2] sm:$0xff]
    %v17 = vlaneseq
    %v18 = vshrl.u32 %v17, 7
    %vm20 = vcmp.lt.s32.totalorder %v18, 300
    %v21 = vsel %vm20, %v16, %v9
    %v22 = vlaneseq
    %v23 = vand.u32 %v22, 127
    %vm25 = vcmp.lt.s32.totalorder %v23, 3
    %v26 = vsel %vm25, %v21, %v9
    %s28 = ssub.s32 256, 1
    %29 = vst [vmem:[#allocation7] sm:%s28] %v26
    %s30 = scalar_lea.vmem %s2, 8
    %v31 = vld [vmem:[%s30] sm:$0xff]
    %v32 = vlaneseq
    %v33 = vshrl.u32 %v32, 7
    %v34 = vadd.s32 %v33, 8
    %vm35 = vcmp.lt.s32.totalorder %v34, 300
    %v36 = vsel %vm35, %v31, %v9
    %v37 = vlaneseq
    %v38 = vand.u32 %v37, 127
    %vm40 = vcmp.lt.s32.totalorder %v38, 3
    %v41 = vsel %vm40, %v36, %v9
    %s42 = scalar_lea.vmem [#allocation7], 8
    %s44 = ssub.s32 256, 1
    %45 = vst [vmem:[%s42] sm:%s44] %v41
    %s46 = scalar_lea.vmem %s2, 16
    %v47 = vld [vmem:[%s46] sm:$0xff]
    %v48 = vlaneseq
    %v49 = vshrl.u32 %v48, 7
    %v50 = vadd.s32 %v49, 16
    %vm51 = vcmp.lt.s32.totalorder %v50, 300
    %v52 = vsel %vm51, %v47, %v9
    %v53 = vlaneseq
    %v54 = vand.u32 %v53, 127
    %vm56 = vcmp.lt.s32.totalorder %v54, 3
    %v57 = vsel %vm56, %v52, %v9
    %s58 = scalar_lea.vmem [#allocation7], 16
    %s60 = ssub.s32 256, 1
    %61 = vst [vmem:[%s58] sm:%s60] %v57
    %s62 = scalar_lea.vmem %s2, 24
    %v63 = vld [vmem:[%s62] sm:$0xff]
    %v64 = vlaneseq
    %v65 = vshrl.u32 %v64, 7
    %v66 = vadd.s32 %v65, 24
    %vm67 = vcmp.lt.s32.totalorder %v66, 300
    %v68 = vsel %vm67, %v63, %v9
    %v69 = vlaneseq
    %v70 = vand.u32 %v69, 127
    %vm72 = vcmp.lt.s32.totalorder %v70, 3
    %v73 = vsel %vm72, %v68, %v9
    %s74 = scalar_lea.vmem [#allocation7], 24
    %s76 = ssub.s32 256, 1
    %77 = vst [vmem:[%s74] sm:%s76] %v73
    %s78 = scalar_lea.vmem %s2, 32
    %v79 = vld [vmem:[%s78] sm:$0xff]
    %v80 = vlaneseq
    %v81 = vshrl.u32 %v80, 7
    %v82 = vadd.s32 %v81, 32
    %vm83 = vcmp.lt.s32.totalorder %v82, 300
    %v84 = vsel %vm83, %v79, %v9
    %v85 = vlaneseq
    %v86 = vand.u32 %v85, 127
    %vm88 = vcmp.lt.s32.totalorder %v86, 3
    %v89 = vsel %vm88, %v84, %v9
    %s90 = scalar_lea.vmem [#allocation7], 32
    %s92 = ssub.s32 256, 1
    %93 = vst [vmem:[%s90] sm:%s92] %v89
    %s94 = scalar_lea.vmem %s2, 40
    %v95 = vld [vmem:[%s94] sm:$0xff]
    %v96 = vlaneseq
    %v97 = vshrl.u32 %v96, 7
    %v98 = vadd.s32 %v97, 40
    %vm99 = vcmp.lt.s32.totalorder %v98, 300
    %v100 = vsel %vm99, %v95, %v9
    %v101 = vlaneseq
    %v102 = vand.u32 %v101, 127
    %vm104 = vcmp.lt.s32.totalorder %v102, 3
    %v105 = vsel %vm104, %v100, %v9
    %s106 = scalar_lea.vmem [#allocation7], 40
    %s108 = ssub.s32 256, 1
    %109 = vst [vmem:[%s106] sm:%s108] %v105
    %s110 = scalar_lea.vmem %s2, 48
    %v111 = vld [vmem:[%s110] sm:$0xff]
    %v112 = vlaneseq
    %v113 = vshrl.u32 %v112, 7
    %v114 = vadd.s32 %v113, 48
    %vm115 = vcmp.lt.s32.totalorder %v114, 300
    %v116 = vsel %vm115, %v111, %v9
    %v117 = vlaneseq
    %v118 = vand.u32 %v117, 127
    %vm120 = vcmp.lt.s32.totalorder %v118, 3
    %v121 = vsel %vm120, %v116, %v9
    %s122 = scalar_lea.vmem [#allocation7], 48
    %s124 = ssub.s32 256, 1
    %125 = vst [vmem:[%s122] sm:%s124] %v121
    %s126 = scalar_lea.vmem %s2, 56
    %v127 = vld [vmem:[%s126] sm:$0xff]
    %v128 = vlaneseq
    %v129 = vshrl.u32 %v128, 7
    %v130 = vadd.s32 %v129, 56
    %vm131 = vcmp.lt.s32.totalorder %v130, 300
    %v132 = vsel %vm131, %v127, %v9
    %v133 = vlaneseq
    %v134 = vand.u32 %v133, 127
    %vm136 = vcmp.lt.s32.totalorder %v134, 3
    %v137 = vsel %vm136, %v132, %v9
    %s138 = scalar_lea.vmem [#allocation7], 56
    %s140 = ssub.s32 256, 1
    %141 = vst [vmem:[%s138] sm:%s140] %v137
    %s142 = scalar_lea.vmem %s2, 64
    %v143 = vld [vmem:[%s142] sm:$0xff]
    %v144 = vlaneseq
    %v145 = vshrl.u32 %v144, 7
    %v146 = vadd.s32 %v145, 64
    %vm147 = vcmp.lt.s32.totalorder %v146, 300
    %v148 = vsel %vm147, %v143, %v9
    %v149 = vlaneseq
    %v150 = vand.u32 %v149, 127
    %vm152 = vcmp.lt.s32.totalorder %v150, 3
    %v153 = vsel %vm152, %v148, %v9
    %s154 = scalar_lea.vmem [#allocation7], 64
    %s156 = ssub.s32 256, 1
    %157 = vst [vmem:[%s154] sm:%s156] %v153
    %s158 = scalar_lea.vmem %s2, 72
    %v159 = vld [vmem:[%s158] sm:$0xff]
    %v160 = vlaneseq
    %v161 = vshrl.u32 %v160, 7
    %v162 = vadd.s32 %v161, 72
    %vm163 = vcmp.lt.s32.totalorder %v162, 300
    %v164 = vsel %vm163, %v159, %v9
    %v165 = vlaneseq
    %v166 = vand.u32 %v165, 127
    %vm168 = vcmp.lt.s32.totalorder %v166, 3
    %v169 = vsel %vm168, %v164, %v9
    %s170 = scalar_lea.vmem [#allocation7], 72
    %s172 = ssub.s32 256, 1
    %173 = vst [vmem:[%s170] sm:%s172] %v169
    %s174 = scalar_lea.vmem %s2, 80
    %v175 = vld [vmem:[%s174] sm:$0xff]
    %v176 = vlaneseq
    %v177 = vshrl.u32 %v176, 7
    %v178 = vadd.s32 %v177, 80
    %vm179 = vcmp.lt.s32.totalorder %v178, 300
    %v180 = vsel %vm179, %v175, %v9
    %v181 = vlaneseq
    %v182 = vand.u32 %v181, 127
    %vm184 = vcmp.lt.s32.totalorder %v182, 3
    %v185 = vsel %vm184, %v180, %v9
    %s186 = scalar_lea.vmem [#allocation7], 80
    %s188 = ssub.s32 256, 1
    %189 = vst [vmem:[%s186] sm:%s188] %v185
    %s190 = scalar_lea.vmem %s2, 88
    %v191 = vld [vmem:[%s190] sm:$0xff]
    %v192 = vlaneseq
    %v193 = vshrl.u32 %v192, 7
    %v194 = vadd.s32 %v193, 88
    %vm195 = vcmp.lt.s32.totalorder %v194, 300
    %v196 = vsel %vm195, %v191, %v9
    %v197 = vlaneseq
    %v198 = vand.u32 %v197, 127
    %vm200 = vcmp.lt.s32.totalorder %v198, 3
    %v201 = vsel %vm200, %v196, %v9
    %s202 = scalar_lea.vmem [#allocation7], 88
    %s204 = ssub.s32 256, 1
    %205 = vst [vmem:[%s202] sm:%s204] %v201
    %s206 = scalar_lea.vmem %s2, 96
    %v207 = vld [vmem:[%s206] sm:$0xff]
    %v208 = vlaneseq
    %v209 = vshrl.u32 %v208, 7
    %v210 = vadd.s32 %v209, 96
    %vm211 = vcmp.lt.s32.totalorder %v210, 300
    %v212 = vsel %vm211, %v207, %v9
    %v213 = vlaneseq
    %v214 = vand.u32 %v213, 127
    %vm216 = vcmp.lt.s32.totalorder %v214, 3
    %v217 = vsel %vm216, %v212, %v9
    %s218 = scalar_lea.vmem [#allocation7], 96
    %s220 = ssub.s32 256, 1
    %221 = vst [vmem:[%s218] sm:%s220] %v217
    %s222 = scalar_lea.vmem %s2, 104
    %v223 = vld [vmem:[%s222] sm:$0xff]
    %v224 = vlaneseq
    %v225 = vshrl.u32 %v224, 7
    %v226 = vadd.s32 %v225, 104
    %vm227 = vcmp.lt.s32.totalorder %v226, 300
    %v228 = vsel %vm227, %v223, %v9
    %v229 = vlaneseq
    %v230 = vand.u32 %v229, 127
    %vm232 = vcmp.lt.s32.totalorder %v230, 3
    %v233 = vsel %vm232, %v228, %v9
    %s234 = scalar_lea.vmem [#allocation7], 104
    %s236 = ssub.s32 256, 1
    %237 = vst [vmem:[%s234] sm:%s236] %v233
    %s238 = scalar_lea.vmem %s2, 112
    %v239 = vld [vmem:[%s238] sm:$0xff]
    %v240 = vlaneseq
    %v241 = vshrl.u32 %v240, 7
    %v242 = vadd.s32 %v241, 112
    %vm243 = vcmp.lt.s32.totalorder %v242, 300
    %v244 = vsel %vm243, %v239, %v9
    %v245 = vlaneseq
    %v246 = vand.u32 %v245, 127
    %vm248 = vcmp.lt.s32.totalorder %v246, 3
    %v249 = vsel %vm248, %v244, %v9
    %s250 = scalar_lea.vmem [#allocation7], 112
    %s252 = ssub.s32 256, 1
    %253 = vst [vmem:[%s250] sm:%s252] %v249
    %s254 = scalar_lea.vmem %s2, 120
    %v255 = vld [vmem:[%s254] sm:$0xff]
    %v256 = vlaneseq
    %v257 = vshrl.u32 %v256, 7
    %v258 = vadd.s32 %v257, 120
    %vm259 = vcmp.lt.s32.totalorder %v258, 300
    %v260 = vsel %vm259, %v255, %v9
    %v261 = vlaneseq
    %v262 = vand.u32 %v261, 127
    %vm264 = vcmp.lt.s32.totalorder %v262, 3
    %v265 = vsel %vm264, %v260, %v9
    %s266 = scalar_lea.vmem [#allocation7], 120
    %s268 = ssub.s32 256, 1
    %269 = vst [vmem:[%s266] sm:%s268] %v265
    %s270 = scalar_lea.vmem %s2, 128
    %v271 = vld [vmem:[%s270] sm:$0xff]
    %v272 = vlaneseq
    %v273 = vshrl.u32 %v272, 7
    %v274 = vadd.s32 %v273, 128
    %vm275 = vcmp.lt.s32.totalorder %v274, 300
    %v276 = vsel %vm275, %v271, %v9
    %v277 = vlaneseq
    %v278 = vand.u32 %v277, 127
    %vm280 = vcmp.lt.s32.totalorder %v278, 3
    %v281 = vsel %vm280, %v276, %v9
    %s282 = scalar_lea.vmem [#allocation7], 128
    %s284 = ssub.s32 256, 1
    %285 = vst [vmem:[%s282] sm:%s284] %v281
    %s286 = scalar_lea.vmem %s2, 136
    %v287 = vld [vmem:[%s286] sm:$0xff]
    %v288 = vlaneseq
    %v289 = vshrl.u32 %v288, 7
    %v290 = vadd.s32 %v289, 136
    %vm291 = vcmp.lt.s32.totalorder %v290, 300
    %v292 = vsel %vm291, %v287, %v9
    %v293 = vlaneseq
    %v294 = vand.u32 %v293, 127
    %vm296 = vcmp.lt.s32.totalorder %v294, 3
    %v297 = vsel %vm296, %v292, %v9
    %s298 = scalar_lea.vmem [#allocation7], 136
    %s300 = ssub.s32 256, 1
    %301 = vst [vmem:[%s298] sm:%s300] %v297
    %s302 = scalar_lea.vmem %s2, 144
    %v303 = vld [vmem:[%s302] sm:$0xff]
    %v304 = vlaneseq
    %v305 = vshrl.u32 %v304, 7
    %v306 = vadd.s32 %v305, 144
    %vm307 = vcmp.lt.s32.totalorder %v306, 300
    %v308 = vsel %vm307, %v303, %v9
    %v309 = vlaneseq
    %v310 = vand.u32 %v309, 127
    %vm312 = vcmp.lt.s32.totalorder %v310, 3
    %v313 = vsel %vm312, %v308, %v9
    %s314 = scalar_lea.vmem [#allocation7], 144
    %s316 = ssub.s32 256, 1
    %317 = vst [vmem:[%s314] sm:%s316] %v313
    %s318 = scalar_lea.vmem %s2, 152
    %v319 = vld [vmem:[%s318] sm:$0xff]
    %v320 = vlaneseq
    %v321 = vshrl.u32 %v320, 7
    %v322 = vadd.s32 %v321, 152
    %vm323 = vcmp.lt.s32.totalorder %v322, 300
    %v324 = vsel %vm323, %v319, %v9
    %v325 = vlaneseq
    %v326 = vand.u32 %v325, 127
    %vm328 = vcmp.lt.s32.totalorder %v326, 3
    %v329 = vsel %vm328, %v324, %v9
    %s330 = scalar_lea.vmem [#allocation7], 152
    %s332 = ssub.s32 256, 1
    %333 = vst [vmem:[%s330] sm:%s332] %v329
    %s334 = scalar_lea.vmem %s2, 160
    %v335 = vld [vmem:[%s334] sm:$0xff]
    %v336 = vlaneseq
    %v337 = vshrl.u32 %v336, 7
    %v338 = vadd.s32 %v337, 160
    %vm339 = vcmp.lt.s32.totalorder %v338, 300
    %v340 = vsel %vm339, %v335, %v9
    %v341 = vlaneseq
    %v342 = vand.u32 %v341, 127
    %vm344 = vcmp.lt.s32.totalorder %v342, 3
    %v345 = vsel %vm344, %v340, %v9
    %s346 = scalar_lea.vmem [#allocation7], 160
    %s348 = ssub.s32 256, 1
    %349 = vst [vmem:[%s346] sm:%s348] %v345
    %s350 = scalar_lea.vmem %s2, 168
    %v351 = vld [vmem:[%s350] sm:$0xff]
    %v352 = vlaneseq
    %v353 = vshrl.u32 %v352, 7
    %v354 = vadd.s32 %v353, 168
    %vm355 = vcmp.lt.s32.totalorder %v354, 300
    %v356 = vsel %vm355, %v351, %v9
    %v357 = vlaneseq
    %v358 = vand.u32 %v357, 127
    %vm360 = vcmp.lt.s32.totalorder %v358, 3
    %v361 = vsel %vm360, %v356, %v9
    %s362 = scalar_lea.vmem [#allocation7], 168
    %s364 = ssub.s32 256, 1
    %365 = vst [vmem:[%s362] sm:%s364] %v361
    %s366 = scalar_lea.vmem %s2, 176
    %v367 = vld [vmem:[%s366] sm:$0xff]
    %v368 = vlaneseq
    %v369 = vshrl.u32 %v368, 7
    %v370 = vadd.s32 %v369, 176
    %vm371 = vcmp.lt.s32.totalorder %v370, 300
    %v372 = vsel %vm371, %v367, %v9
    %v373 = vlaneseq
    %v374 = vand.u32 %v373, 127
    %vm376 = vcmp.lt.s32.totalorder %v374, 3
    %v377 = vsel %vm376, %v372, %v9
    %s378 = scalar_lea.vmem [#allocation7], 176
    %s380 = ssub.s32 256, 1
    %381 = vst [vmem:[%s378] sm:%s380] %v377
    %s382 = scalar_lea.vmem %s2, 184
    %v383 = vld [vmem:[%s382] sm:$0xff]
    %v384 = vlaneseq
    %v385 = vshrl.u32 %v384, 7
    %v386 = vadd.s32 %v385, 184
    %vm387 = vcmp.lt.s32.totalorder %v386, 300
    %v388 = vsel %vm387, %v383, %v9
    %v389 = vlaneseq
    %v390 = vand.u32 %v389, 127
    %vm392 = vcmp.lt.s32.totalorder %v390, 3
    %v393 = vsel %vm392, %v388, %v9
    %s394 = scalar_lea.vmem [#allocation7], 184
    %s396 = ssub.s32 256, 1
    %397 = vst [vmem:[%s394] sm:%s396] %v393
    %s398 = scalar_lea.vmem %s2, 192
    %v399 = vld [vmem:[%s398] sm:$0xff]
    %v400 = vlaneseq
    %v401 = vshrl.u32 %v400, 7
    %v402 = vadd.s32 %v401, 192
    %vm403 = vcmp.lt.s32.totalorder %v402, 300
    %v404 = vsel %vm403, %v399, %v9
    %v405 = vlaneseq
    %v406 = vand.u32 %v405, 127
    %vm408 = vcmp.lt.s32.totalorder %v406, 3
    %v409 = vsel %vm408, %v404, %v9
    %s410 = scalar_lea.vmem [#allocation7], 192
    %s412 = ssub.s32 256, 1
    %413 = vst [vmem:[%s410] sm:%s412] %v409
    %s414 = scalar_lea.vmem %s2, 200
    %v415 = vld [vmem:[%s414] sm:$0xff]
    %v416 = vlaneseq
    %v417 = vshrl.u32 %v416, 7
    %v418 = vadd.s32 %v417, 200
    %vm419 = vcmp.lt.s32.totalorder %v418, 300
    %v420 = vsel %vm419, %v415, %v9
    %v421 = vlaneseq
    %v422 = vand.u32 %v421, 127
    %vm424 = vcmp.lt.s32.totalorder %v422, 3
    %v425 = vsel %vm424, %v420, %v9
    %s426 = scalar_lea.vmem [#allocation7], 200
    %s428 = ssub.s32 256, 1
    %429 = vst [vmem:[%s426] sm:%s428] %v425
    %s430 = scalar_lea.vmem %s2, 208
    %v431 = vld [vmem:[%s430] sm:$0xff]
    %v432 = vlaneseq
    %v433 = vshrl.u32 %v432, 7
    %v434 = vadd.s32 %v433, 208
    %vm435 = vcmp.lt.s32.totalorder %v434, 300
    %v436 = vsel %vm435, %v431, %v9
    %v437 = vlaneseq
    %v438 = vand.u32 %v437, 127
    %vm440 = vcmp.lt.s32.totalorder %v438, 3
    %v441 = vsel %vm440, %v436, %v9
    %s442 = scalar_lea.vmem [#allocation7], 208
    %s444 = ssub.s32 256, 1
    %445 = vst [vmem:[%s442] sm:%s444] %v441
    %s446 = scalar_lea.vmem %s2, 216
    %v447 = vld [vmem:[%s446] sm:$0xff]
    %v448 = vlaneseq
    %v449 = vshrl.u32 %v448, 7
    %v450 = vadd.s32 %v449, 216
    %vm451 = vcmp.lt.s32.totalorder %v450, 300
    %v452 = vsel %vm451, %v447, %v9
    %v453 = vlaneseq
    %v454 = vand.u32 %v453, 127
    %vm456 = vcmp.lt.s32.totalorder %v454, 3
    %v457 = vsel %vm456, %v452, %v9
    %s458 = scalar_lea.vmem [#allocation7], 216
    %s460 = ssub.s32 256, 1
    %461 = vst [vmem:[%s458] sm:%s460] %v457
    %s462 = scalar_lea.vmem %s2, 224
    %v463 = vld [vmem:[%s462] sm:$0xff]
    %v464 = vlaneseq
    %v465 = vshrl.u32 %v464, 7
    %v466 = vadd.s32 %v465, 224
    %vm467 = vcmp.lt.s32.totalorder %v466, 300
    %v468 = vsel %vm467, %v463, %v9
    %v469 = vlaneseq
    %v470 = vand.u32 %v469, 127
    %vm472 = vcmp.lt.s32.totalorder %v470, 3
    %v473 = vsel %vm472, %v468, %v9
    %s474 = scalar_lea.vmem [#allocation7], 224
    %s476 = ssub.s32 256, 1
    %477 = vst [vmem:[%s474] sm:%s476] %v473
    %s478 = scalar_lea.vmem %s2, 232
    %v479 = vld [vmem:[%s478] sm:$0xff]
    %v480 = vlaneseq
    %v481 = vshrl.u32 %v480, 7
    %v482 = vadd.s32 %v481, 232
    %vm483 = vcmp.lt.s32.totalorder %v482, 300
    %v484 = vsel %vm483, %v479, %v9
    %v485 = vlaneseq
    %v486 = vand.u32 %v485, 127
    %vm488 = vcmp.lt.s32.totalorder %v486, 3
    %v489 = vsel %vm488, %v484, %v9
    %s490 = scalar_lea.vmem [#allocation7], 232
    %s492 = ssub.s32 256, 1
    %493 = vst [vmem:[%s490] sm:%s492] %v489
    %s494 = scalar_lea.vmem %s2, 240
    %v495 = vld [vmem:[%s494] sm:$0xff]
    %v496 = vlaneseq
    %v497 = vshrl.u32 %v496, 7
    %v498 = vadd.s32 %v497, 240
    %vm499 = vcmp.lt.s32.totalorder %v498, 300
    %v500 = vsel %vm499, %v495, %v9
    %v501 = vlaneseq
    %v502 = vand.u32 %v501, 127
    %vm504 = vcmp.lt.s32.totalorder %v502, 3
    %v505 = vsel %vm504, %v500, %v9
    %s506 = scalar_lea.vmem [#allocation7], 240
    %s508 = ssub.s32 256, 1
    %509 = vst [vmem:[%s506] sm:%s508] %v505
    %s510 = scalar_lea.vmem %s2, 248
    %v511 = vld [vmem:[%s510] sm:$0xff]
    %v512 = vlaneseq
    %v513 = vshrl.u32 %v512, 7
    %v514 = vadd.s32 %v513, 248
    %vm515 = vcmp.lt.s32.totalorder %v514, 300
    %v516 = vsel %vm515, %v511, %v9
    %v517 = vlaneseq
    %v518 = vand.u32 %v517, 127
    %vm520 = vcmp.lt.s32.totalorder %v518, 3
    %v521 = vsel %vm520, %v516, %v9
    %s522 = scalar_lea.vmem [#allocation7], 248
    %s524 = ssub.s32 256, 1
    %525 = vst [vmem:[%s522] sm:%s524] %v521
    %s526 = scalar_lea.vmem %s2, 256
    %v527 = vld [vmem:[%s526] sm:$0xff]
    %v528 = vlaneseq
    %v529 = vshrl.u32 %v528, 7
    %v530 = vadd.s32 %v529, 256
    %vm531 = vcmp.lt.s32.totalorder %v530, 300
    %v532 = vsel %vm531, %v527, %v9
    %v533 = vlaneseq
    %v534 = vand.u32 %v533, 127
    %vm536 = vcmp.lt.s32.totalorder %v534, 3
    %v537 = vsel %vm536, %v532, %v9
    %s538 = scalar_lea.vmem [#allocation7], 256
    %s540 = ssub.s32 256, 1
    %541 = vst [vmem:[%s538] sm:%s540] %v537
    %s542 = scalar_lea.vmem %s2, 264
    %v543 = vld [vmem:[%s542] sm:$0xff]
    %v544 = vlaneseq
    %v545 = vshrl.u32 %v544, 7
    %v546 = vadd.s32 %v545, 264
    %vm547 = vcmp.lt.s32.totalorder %v546, 300
    %v548 = vsel %vm547, %v543, %v9
    %v549 = vlaneseq
    %v550 = vand.u32 %v549, 127
    %vm552 = vcmp.lt.s32.totalorder %v550, 3
    %v553 = vsel %vm552, %v548, %v9
    %s554 = scalar_lea.vmem [#allocation7], 264
    %s556 = ssub.s32 256, 1
    %557 = vst [vmem:[%s554] sm:%s556] %v553
    %s558 = scalar_lea.vmem %s2, 272
    %v559 = vld [vmem:[%s558] sm:$0xff]
    %v560 = vlaneseq
    %v561 = vshrl.u32 %v560, 7
    %v562 = vadd.s32 %v561, 272
    %vm563 = vcmp.lt.s32.totalorder %v562, 300
    %v564 = vsel %vm563, %v559, %v9
    %v565 = vlaneseq
    %v566 = vand.u32 %v565, 127
    %vm568 = vcmp.lt.s32.totalorder %v566, 3
    %v569 = vsel %vm568, %v564, %v9
    %s570 = scalar_lea.vmem [#allocation7], 272
    %s572 = ssub.s32 256, 1
    %573 = vst [vmem:[%s570] sm:%s572] %v569
    %s574 = scalar_lea.vmem %s2, 280
    %v575 = vld [vmem:[%s574] sm:$0xff]
    %v576 = vlaneseq
    %v577 = vshrl.u32 %v576, 7
    %v578 = vadd.s32 %v577, 280
    %vm579 = vcmp.lt.s32.totalorder %v578, 300
    %v580 = vsel %vm579, %v575, %v9
    %v581 = vlaneseq
    %v582 = vand.u32 %v581, 127
    %vm584 = vcmp.lt.s32.totalorder %v582, 3
    %v585 = vsel %vm584, %v580, %v9
    %s586 = scalar_lea.vmem [#allocation7], 280
    %s588 = ssub.s32 256, 1
    %589 = vst [vmem:[%s586] sm:%s588] %v585
    %s590 = scalar_lea.vmem %s2, 288
    %v591 = vld [vmem:[%s590] sm:$0xff]
    %v592 = vlaneseq
    %v593 = vshrl.u32 %v592, 7
    %v594 = vadd.s32 %v593, 288
    %vm595 = vcmp.lt.s32.totalorder %v594, 300
    %v596 = vsel %vm595, %v591, %v9
    %v597 = vlaneseq
    %v598 = vand.u32 %v597, 127
    %vm600 = vcmp.lt.s32.totalorder %v598, 3
    %v601 = vsel %vm600, %v596, %v9
    %s602 = scalar_lea.vmem [#allocation7], 288
    %s604 = ssub.s32 256, 1
    %605 = vst [vmem:[%s602] sm:%s604] %v601
    %s606 = scalar_lea.vmem %s2, 296
    %v607 = vld [vmem:[%s606] sm:$0xff]
    %v608 = vlaneseq
    %v609 = vshrl.u32 %v608, 7
    %v610 = vadd.s32 %v609, 296
    %vm611 = vcmp.lt.s32.totalorder %v610, 300
    %v612 = vsel %vm611, %v607, %v9
    %v613 = vlaneseq
    %v614 = vand.u32 %v613, 127
    %vm616 = vcmp.lt.s32.totalorder %v614, 3
    %v617 = vsel %vm616, %v612, %v9
    %s618 = scalar_lea.vmem [#allocation7], 296
    %s620 = ssub.s32 256, 1
    %621 = vst [vmem:[%s618] sm:%s620] %v617
    %v623 = vld [vmem:[#allocation7] sm:$0xff]
    %v624 = vld [vmem:[#allocation7 + $0x8] sm:$0xff]
    %v625 = vld [vmem:[#allocation7 + $0x10] sm:$0xff]
    %v626 = vld [vmem:[#allocation7 + $0x18] sm:$0xff]
    %v627 = vld [vmem:[#allocation7 + $0x20] sm:$0xff]
    %v628 = vld [vmem:[#allocation7 + $0x28] sm:$0xff]
    %v629 = vld [vmem:[#allocation7 + $0x30] sm:$0xff]
    %v630 = vld [vmem:[#allocation7 + $0x38] sm:$0xff]
    %v631 = vld [vmem:[#allocation7 + $0x40] sm:$0xff]
    %v632 = vld [vmem:[#allocation7 + $0x48] sm:$0xff]
    %v633 = vld [vmem:[#allocation7 + $0x50] sm:$0xff]
    %v634 = vld [vmem:[#allocation7 + $0x58] sm:$0xff]
    %v635 = vld [vmem:[#allocation7 + $0x60] sm:$0xff]
    %v636 = vld [vmem:[#allocation7 + $0x68] sm:$0xff]
    %v637 = vld [vmem:[#allocation7 + $0x70] sm:$0xff]
    %v638 = vld [vmem:[#allocation7 + $0x78] sm:$0xff]
    %v639 = vld [vmem:[#allocation7 + $0x80] sm:$0xff]
    %v640 = vld [vmem:[#allocation7 + $0x88] sm:$0xff]
    %v641 = vld [vmem:[#allocation7 + $0x90] sm:$0xff]
    %v642 = vld [vmem:[#allocation7 + $0x98] sm:$0xff]
    %v643 = vld [vmem:[#allocation7 + $0xa0] sm:$0xff]
    %v644 = vld [vmem:[#allocation7 + $0xa8] sm:$0xff]
    %v645 = vld [vmem:[#allocation7 + $0xb0] sm:$0xff]
    %v646 = vld [vmem:[#allocation7 + $0xb8] sm:$0xff]
    %v647 = vld [vmem:[#allocation7 + $0xc0] sm:$0xff]
    %v648 = vld [vmem:[#allocation7 + $0xc8] sm:$0xff]
    %v649 = vld [vmem:[#allocation7 + $0xd0] sm:$0xff]
    %v650 = vld [vmem:[#allocation7 + $0xd8] sm:$0xff]
    %v651 = vld [vmem:[#allocation7 + $0xe0] sm:$0xff]
    %v652 = vld [vmem:[#allocation7 + $0xe8] sm:$0xff]
    %v653 = vld [vmem:[#allocation7 + $0xf0] sm:$0xff]
    %v654 = vld [vmem:[#allocation7 + $0xf8] sm:$0xff]
    %v655 = vld [vmem:[#allocation7 + $0x100] sm:$0xff]
    %v656 = vld [vmem:[#allocation7 + $0x108] sm:$0xff]
    %v657 = vld [vmem:[#allocation7 + $0x110] sm:$0xff]
    %v658 = vld [vmem:[#allocation7 + $0x118] sm:$0xff]
    %v659 = vld [vmem:[#allocation7 + $0x120] sm:$0xff]
    %v660 = vld [vmem:[#allocation7 + $0x128] sm:$0xff]
    %v661 = vld [vmem:[%s1 + $0x3] sm:$0x1]
    %663 = vset.pattern.permute.xlu0 0
    %664 = vperm.xlu0 %663, %v623
    %v665 = vpop.permute.xlu0 %664
    %668 = vset.pattern.permute.xlu0 0
    %669 = vperm.xlu0 %668, %v624
    %v670 = vpop.permute.xlu0 %669
    %673 = vset.pattern.permute.xlu0 0
    %674 = vperm.xlu0 %673, %v625
    %v675 = vpop.permute.xlu0 %674
    %678 = vset.pattern.permute.xlu0 0
    %679 = vperm.xlu0 %678, %v626
    %v680 = vpop.permute.xlu0 %679
    %683 = vset.pattern.permute.xlu0 0
    %684 = vperm.xlu0 %683, %v627
    %v685 = vpop.permute.xlu0 %684
    %688 = vset.pattern.permute.xlu0 0
    %689 = vperm.xlu0 %688, %v628
    %v690 = vpop.permute.xlu0 %689
    %693 = vset.pattern.permute.xlu0 0
    %694 = vperm.xlu0 %693, %v629
    %v695 = vpop.permute.xlu0 %694
    %698 = vset.pattern.permute.xlu0 0
    %699 = vperm.xlu0 %698, %v630
    %v700 = vpop.permute.xlu0 %699
    %703 = vset.pattern.permute.xlu0 0
    %704 = vperm.xlu0 %703, %v631
    %v705 = vpop.permute.xlu0 %704
    %708 = vset.pattern.permute.xlu0 0
    %709 = vperm.xlu0 %708, %v632
    %v710 = vpop.permute.xlu0 %709
    %713 = vset.pattern.permute.xlu0 0
    %714 = vperm.xlu0 %713, %v633
    %v715 = vpop.permute.xlu0 %714
    %718 = vset.pattern.permute.xlu0 0
    %719 = vperm.xlu0 %718, %v634
    %v720 = vpop.permute.xlu0 %719
    %723 = vset.pattern.permute.xlu0 0
    %724 = vperm.xlu0 %723, %v635
    %v725 = vpop.permute.xlu0 %724
    %728 = vset.pattern.permute.xlu0 0
    %729 = vperm.xlu0 %728, %v636
    %v730 = vpop.permute.xlu0 %729
    %733 = vset.pattern.permute.xlu0 0
    %734 = vperm.xlu0 %733, %v637
    %v735 = vpop.permute.xlu0 %734
    %738 = vset.pattern.permute.xlu0 0
    %739 = vperm.xlu0 %738, %v638
    %v740 = vpop.permute.xlu0 %739
    %743 = vset.pattern.permute.xlu0 0
    %744 = vperm.xlu0 %743, %v639
    %v745 = vpop.permute.xlu0 %744
    %748 = vset.pattern.permute.xlu0 0
    %749 = vperm.xlu0 %748, %v640
    %v750 = vpop.permute.xlu0 %749
    %753 = vset.pattern.permute.xlu0 0
    %754 = vperm.xlu0 %753, %v641
    %v755 = vpop.permute.xlu0 %754
    %758 = vset.pattern.permute.xlu0 0
    %759 = vperm.xlu0 %758, %v642
    %v760 = vpop.permute.xlu0 %759
    %763 = vset.pattern.permute.xlu0 0
    %764 = vperm.xlu0 %763, %v643
    %v765 = vpop.permute.xlu0 %764
    %768 = vset.pattern.permute.xlu0 0
    %769 = vperm.xlu0 %768, %v644
    %v770 = vpop.permute.xlu0 %769
    %773 = vset.pattern.permute.xlu0 0
    %774 = vperm.xlu0 %773, %v645
    %v775 = vpop.permute.xlu0 %774
    %778 = vset.pattern.permute.xlu0 0
    %779 = vperm.xlu0 %778, %v646
    %v780 = vpop.permute.xlu0 %779
    %783 = vset.pattern.permute.xlu0 0
    %784 = vperm.xlu0 %783, %v647
    %v785 = vpop.permute.xlu0 %784
    %788 = vset.pattern.permute.xlu0 0
    %789 = vperm.xlu0 %788, %v648
    %v790 = vpop.permute.xlu0 %789
    %793 = vset.pattern.permute.xlu0 0
    %794 = vperm.xlu0 %793, %v649
    %v795 = vpop.permute.xlu0 %794
    %798 = vset.pattern.permute.xlu0 0
    %799 = vperm.xlu0 %798, %v650
    %v800 = vpop.permute.xlu0 %799
    %803 = vset.pattern.permute.xlu0 0
    %804 = vperm.xlu0 %803, %v651
    %v805 = vpop.permute.xlu0 %804
    %808 = vset.pattern.permute.xlu0 0
    %809 = vperm.xlu0 %808, %v652
    %v810 = vpop.permute.xlu0 %809
    %813 = vset.pattern.permute.xlu0 0
    %814 = vperm.xlu0 %813, %v653
    %v815 = vpop.permute.xlu0 %814
    %818 = vset.pattern.permute.xlu0 0
    %819 = vperm.xlu0 %818, %v654
    %v820 = vpop.permute.xlu0 %819
    %823 = vset.pattern.permute.xlu0 0
    %824 = vperm.xlu0 %823, %v655
    %v825 = vpop.permute.xlu0 %824
    %828 = vset.pattern.permute.xlu0 0
    %829 = vperm.xlu0 %828, %v656
    %v830 = vpop.permute.xlu0 %829
    %833 = vset.pattern.permute.xlu0 0
    %834 = vperm.xlu0 %833, %v657
    %v835 = vpop.permute.xlu0 %834
    %838 = vset.pattern.permute.xlu0 0
    %839 = vperm.xlu0 %838, %v658
    %v840 = vpop.permute.xlu0 %839
    %843 = vset.pattern.permute.xlu0 0
    %844 = vperm.xlu0 %843, %v659
    %v845 = vpop.permute.xlu0 %844
    %848 = vset.pattern.permute.xlu0 0
    %849 = vperm.xlu0 %848, %v660
    %v850 = vpop.permute.xlu0 %849
    %v852 = vlaneseq
    %v853 = vshrl.u32 %v852, 7
    %v854 = vsub.s32 0, %v853
    %v855 = vrot.slane %v661, %v854
    %v856 = vmul.f32 %v665, %v855
    %v857 = vmul.f32 %v670, %v855
    %v858 = vmul.f32 %v675, %v855
    %v859 = vmul.f32 %v680, %v855
    %v860 = vmul.f32 %v685, %v855
    %v861 = vmul.f32 %v690, %v855
    %v862 = vmul.f32 %v695, %v855
    %v863 = vmul.f32 %v700, %v855
    %v864 = vmul.f32 %v705, %v855
    %v865 = vmul.f32 %v710, %v855
    %v866 = vmul.f32 %v715, %v855
    %v867 = vmul.f32 %v720, %v855
    %v868 = vmul.f32 %v725, %v855
    %v869 = vmul.f32 %v730, %v855
    %v870 = vmul.f32 %v735, %v855
    %v871 = vmul.f32 %v740, %v855
    %v872 = vmul.f32 %v745, %v855
    %v873 = vmul.f32 %v750, %v855
    %v874 = vmul.f32 %v755, %v855
    %v875 = vmul.f32 %v760, %v855
    %v876 = vmul.f32 %v765, %v855
    %v877 = vmul.f32 %v770, %v855
    %v878 = vmul.f32 %v775, %v855
    %v879 = vmul.f32 %v780, %v855
    %v880 = vmul.f32 %v785, %v855
    %v881 = vmul.f32 %v790, %v855
    %v882 = vmul.f32 %v795, %v855
    %v883 = vmul.f32 %v800, %v855
    %v884 = vmul.f32 %v805, %v855
    %v885 = vmul.f32 %v810, %v855
    %v886 = vmul.f32 %v815, %v855
    %v887 = vmul.f32 %v820, %v855
    %v888 = vmul.f32 %v825, %v855
    %v889 = vmul.f32 %v830, %v855
    %v890 = vmul.f32 %v835, %v855
    %v891 = vmul.f32 %v840, %v855
    %v892 = vmul.f32 %v845, %v855
    %v893 = vmul.f32 %v850, %v855
    %v894 = vld [vmem:[%s1 + $0x4] sm:$0x1]
    %895 = vset.pattern.permute.xlu0 1
    %896 = vperm.xlu0 %895, %v623
    %v897 = vpop.permute.xlu0 %896
    %899 = vset.pattern.permute.xlu0 1
    %900 = vperm.xlu0 %899, %v624
    %v901 = vpop.permute.xlu0 %900
    %903 = vset.pattern.permute.xlu0 1
    %904 = vperm.xlu0 %903, %v625
    %v905 = vpop.permute.xlu0 %904
    %907 = vset.pattern.permute.xlu0 1
    %908 = vperm.xlu0 %907, %v626
    %v909 = vpop.permute.xlu0 %908
    %911 = vset.pattern.permute.xlu0 1
    %912 = vperm.xlu0 %911, %v627
    %v913 = vpop.permute.xlu0 %912
    %915 = vset.pattern.permute.xlu0 1
    %916 = vperm.xlu0 %915, %v628
    %v917 = vpop.permute.xlu0 %916
    %919 = vset.pattern.permute.xlu0 1
    %920 = vperm.xlu0 %919, %v629
    %v921 = vpop.permute.xlu0 %920
    %923 = vset.pattern.permute.xlu0 1
    %924 = vperm.xlu0 %923, %v630
    %v925 = vpop.permute.xlu0 %924
    %927 = vset.pattern.permute.xlu0 1
    %928 = vperm.xlu0 %927, %v631
    %v929 = vpop.permute.xlu0 %928
    %931 = vset.pattern.permute.xlu0 1
    %932 = vperm.xlu0 %931, %v632
    %v933 = vpop.permute.xlu0 %932
    %935 = vset.pattern.permute.xlu0 1
    %936 = vperm.xlu0 %935, %v633
    %v937 = vpop.permute.xlu0 %936
    %939 = vset.pattern.permute.xlu0 1
    %940 = vperm.xlu0 %939, %v634
    %v941 = vpop.permute.xlu0 %940
    %943 = vset.pattern.permute.xlu0 1
    %944 = vperm.xlu0 %943, %v635
    %v945 = vpop.permute.xlu0 %944
    %947 = vset.pattern.permute.xlu0 1
    %948 = vperm.xlu0 %947, %v636
    %v949 = vpop.permute.xlu0 %948
    %951 = vset.pattern.permute.xlu0 1
    %952 = vperm.xlu0 %951, %v637
    %v953 = vpop.permute.xlu0 %952
    %955 = vset.pattern.permute.xlu0 1
    %956 = vperm.xlu0 %955, %v638
    %v957 = vpop.permute.xlu0 %956
    %959 = vset.pattern.permute.xlu0 1
    %960 = vperm.xlu0 %959, %v639
    %v961 = vpop.permute.xlu0 %960
    %963 = vset.pattern.permute.xlu0 1
    %964 = vperm.xlu0 %963, %v640
    %v965 = vpop.permute.xlu0 %964
    %967 = vset.pattern.permute.xlu0 1
    %968 = vperm.xlu0 %967, %v641
    %v969 = vpop.permute.xlu0 %968
    %971 = vset.pattern.permute.xlu0 1
    %972 = vperm.xlu0 %971, %v642
    %v973 = vpop.permute.xlu0 %972
    %975 = vset.pattern.permute.xlu0 1
    %976 = vperm.xlu0 %975, %v643
    %v977 = vpop.permute.xlu0 %976
    %979 = vset.pattern.permute.xlu0 1
    %980 = vperm.xlu0 %979, %v644
    %v981 = vpop.permute.xlu0 %980
    %983 = vset.pattern.permute.xlu0 1
    %984 = vperm.xlu0 %983, %v645
    %v985 = vpop.permute.xlu0 %984
    %987 = vset.pattern.permute.xlu0 1
    %988 = vperm.xlu0 %987, %v646
    %v989 = vpop.permute.xlu0 %988
    %991 = vset.pattern.permute.xlu0 1
    %992 = vperm.xlu0 %991, %v647
    %v993 = vpop.permute.xlu0 %992
    %995 = vset.pattern.permute.xlu0 1
    %996 = vperm.xlu0 %995, %v648
    %v997 = vpop.permute.xlu0 %996
    %999 = vset.pattern.permute.xlu0 1
    %1000 = vperm.xlu0 %999, %v649
    %v1001 = vpop.permute.xlu0 %1000
    %1003 = vset.pattern.permute.xlu0 1
    %1004 = vperm.xlu0 %1003, %v650
    %v1005 = vpop.permute.xlu0 %1004
    %1007 = vset.pattern.permute.xlu0 1
    %1008 = vperm.xlu0 %1007, %v651
    %v1009 = vpop.permute.xlu0 %1008
    %1011 = vset.pattern.permute.xlu0 1
    %1012 = vperm.xlu0 %1011, %v652
    %v1013 = vpop.permute.xlu0 %1012
    %1015 = vset.pattern.permute.xlu0 1
    %1016 = vperm.xlu0 %1015, %v653
    %v1017 = vpop.permute.xlu0 %1016
    %1019 = vset.pattern.permute.xlu0 1
    %1020 = vperm.xlu0 %1019, %v654
    %v1021 = vpop.permute.xlu0 %1020
    %1023 = vset.pattern.permute.xlu0 1
    %1024 = vperm.xlu0 %1023, %v655
    %v1025 = vpop.permute.xlu0 %1024
    %1027 = vset.pattern.permute.xlu0 1
    %1028 = vperm.xlu0 %1027, %v656
    %v1029 = vpop.permute.xlu0 %1028
    %1031 = vset.pattern.permute.xlu0 1
    %1032 = vperm.xlu0 %1031, %v657
    %v1033 = vpop.permute.xlu0 %1032
    %1035 = vset.pattern.permute.xlu0 1
    %1036 = vperm.xlu0 %1035, %v658
    %v1037 = vpop.permute.xlu0 %1036
    %1039 = vset.pattern.permute.xlu0 1
    %1040 = vperm.xlu0 %1039, %v659
    %v1041 = vpop.permute.xlu0 %1040
    %1043 = vset.pattern.permute.xlu0 1
    %1044 = vperm.xlu0 %1043, %v660
    %v1045 = vpop.permute.xlu0 %1044
    %v1047 = vlaneseq
    %v1048 = vshrl.u32 %v1047, 7
    %v1049 = vsub.s32 0, %v1048
    %v1050 = vrot.slane %v894, %v1049
    %v1051 = vmul.f32 %v897, %v1050
    %v1052 = vmul.f32 %v901, %v1050
    %v1053 = vmul.f32 %v905, %v1050
    %v1054 = vmul.f32 %v909, %v1050
    %v1055 = vmul.f32 %v913, %v1050
    %v1056 = vmul.f32 %v917, %v1050
    %v1057 = vmul.f32 %v921, %v1050
    %v1058 = vmul.f32 %v925, %v1050
    %v1059 = vmul.f32 %v929, %v1050
    %v1060 = vmul.f32 %v933, %v1050
    %v1061 = vmul.f32 %v937, %v1050
    %v1062 = vmul.f32 %v941, %v1050
    %v1063 = vmul.f32 %v945, %v1050
    %v1064 = vmul.f32 %v949, %v1050
    %v1065 = vmul.f32 %v953, %v1050
    %v1066 = vmul.f32 %v957, %v1050
    %v1067 = vmul.f32 %v961, %v1050
    %v1068 = vmul.f32 %v965, %v1050
    %v1069 = vmul.f32 %v969, %v1050
    %v1070 = vmul.f32 %v973, %v1050
    %v1071 = vmul.f32 %v977, %v1050
    %v1072 = vmul.f32 %v981, %v1050
    %v1073 = vmul.f32 %v985, %v1050
    %v1074 = vmul.f32 %v989, %v1050
    %v1075 = vmul.f32 %v993, %v1050
    %v1076 = vmul.f32 %v997, %v1050
    %v1077 = vmul.f32 %v1001, %v1050
    %v1078 = vmul.f32 %v1005, %v1050
    %v1079 = vmul.f32 %v1009, %v1050
    %v1080 = vmul.f32 %v1013, %v1050
    %v1081 = vmul.f32 %v1017, %v1050
    %v1082 = vmul.f32 %v1021, %v1050
    %v1083 = vmul.f32 %v1025, %v1050
    %v1084 = vmul.f32 %v1029, %v1050
    %v1085 = vmul.f32 %v1033, %v1050
    %v1086 = vmul.f32 %v1037, %v1050
    %v1087 = vmul.f32 %v1041, %v1050
    %v1088 = vmul.f32 %v1045, %v1050
    %v1089 = vadd.f32 %v856, %v1051
    %v1090 = vadd.f32 %v857, %v1052
    %v1091 = vadd.f32 %v858, %v1053
    %v1092 = vadd.f32 %v859, %v1054
    %v1093 = vadd.f32 %v860, %v1055
    %v1094 = vadd.f32 %v861, %v1056
    %v1095 = vadd.f32 %v862, %v1057
    %v1096 = vadd.f32 %v863, %v1058
    %v1097 = vadd.f32 %v864, %v1059
    %v1098 = vadd.f32 %v865, %v1060
    %v1099 = vadd.f32 %v866, %v1061
    %v1100 = vadd.f32 %v867, %v1062
    %v1101 = vadd.f32 %v868, %v1063
    %v1102 = vadd.f32 %v869, %v1064
    %v1103 = vadd.f32 %v870, %v1065
    %v1104 = vadd.f32 %v871, %v1066
    %v1105 = vadd.f32 %v872, %v1067
    %v1106 = vadd.f32 %v873, %v1068
    %v1107 = vadd.f32 %v874, %v1069
    %v1108 = vadd.f32 %v875, %v1070
    %v1109 = vadd.f32 %v876, %v1071
    %v1110 = vadd.f32 %v877, %v1072
    %v1111 = vadd.f32 %v878, %v1073
    %v1112 = vadd.f32 %v879, %v1074
    %v1113 = vadd.f32 %v880, %v1075
    %v1114 = vadd.f32 %v881, %v1076
    %v1115 = vadd.f32 %v882, %v1077
    %v1116 = vadd.f32 %v883, %v1078
    %v1117 = vadd.f32 %v884, %v1079
    %v1118 = vadd.f32 %v885, %v1080
    %v1119 = vadd.f32 %v886, %v1081
    %v1120 = vadd.f32 %v887, %v1082
    %v1121 = vadd.f32 %v888, %v1083
    %v1122 = vadd.f32 %v889, %v1084
    %v1123 = vadd.f32 %v890, %v1085
    %v1124 = vadd.f32 %v891, %v1086
    %v1125 = vadd.f32 %v892, %v1087
    %v1126 = vadd.f32 %v893, %v1088
    %v1127 = vld [vmem:[%s1 + $0x5] sm:$0x1]
    %1128 = vset.pattern.permute.xlu0 2
    %1129 = vperm.xlu0 %1128, %v623
    %v1130 = vpop.permute.xlu0 %1129
    %1132 = vset.pattern.permute.xlu0 2
    %1133 = vperm.xlu0 %1132, %v624
    %v1134 = vpop.permute.xlu0 %1133
    %1136 = vset.pattern.permute.xlu0 2
    %1137 = vperm.xlu0 %1136, %v625
    %v1138 = vpop.permute.xlu0 %1137
    %1140 = vset.pattern.permute.xlu0 2
    %1141 = vperm.xlu0 %1140, %v626
    %v1142 = vpop.permute.xlu0 %1141
    %1144 = vset.pattern.permute.xlu0 2
    %1145 = vperm.xlu0 %1144, %v627
    %v1146 = vpop.permute.xlu0 %1145
    %1148 = vset.pattern.permute.xlu0 2
    %1149 = vperm.xlu0 %1148, %v628
    %v1150 = vpop.permute.xlu0 %1149
    %1152 = vset.pattern.permute.xlu0 2
    %1153 = vperm.xlu0 %1152, %v629
    %v1154 = vpop.permute.xlu0 %1153
    %1156 = vset.pattern.permute.xlu0 2
    %1157 = vperm.xlu0 %1156, %v630
    %v1158 = vpop.permute.xlu0 %1157
    %1160 = vset.pattern.permute.xlu0 2
    %1161 = vperm.xlu0 %1160, %v631
    %v1162 = vpop.permute.xlu0 %1161
    %1164 = vset.pattern.permute.xlu0 2
    %1165 = vperm.xlu0 %1164, %v632
    %v1166 = vpop.permute.xlu0 %1165
    %1168 = vset.pattern.permute.xlu0 2
    %1169 = vperm.xlu0 %1168, %v633
    %v1170 = vpop.permute.xlu0 %1169
    %1172 = vset.pattern.permute.xlu0 2
    %1173 = vperm.xlu0 %1172, %v634
    %v1174 = vpop.permute.xlu0 %1173
    %1176 = vset.pattern.permute.xlu0 2
    %1177 = vperm.xlu0 %1176, %v635
    %v1178 = vpop.permute.xlu0 %1177
    %1180 = vset.pattern.permute.xlu0 2
    %1181 = vperm.xlu0 %1180, %v636
    %v1182 = vpop.permute.xlu0 %1181
    %1184 = vset.pattern.permute.xlu0 2
    %1185 = vperm.xlu0 %1184, %v637
    %v1186 = vpop.permute.xlu0 %1185
    %1188 = vset.pattern.permute.xlu0 2
    %1189 = vperm.xlu0 %1188, %v638
    %v1190 = vpop.permute.xlu0 %1189
    %1192 = vset.pattern.permute.xlu0 2
    %1193 = vperm.xlu0 %1192, %v639
    %v1194 = vpop.permute.xlu0 %1193
    %1196 = vset.pattern.permute.xlu0 2
    %1197 = vperm.xlu0 %1196, %v640
    %v1198 = vpop.permute.xlu0 %1197
    %1200 = vset.pattern.permute.xlu0 2
    %1201 = vperm.xlu0 %1200, %v641
    %v1202 = vpop.permute.xlu0 %1201
    %1204 = vset.pattern.permute.xlu0 2
    %1205 = vperm.xlu0 %1204, %v642
    %v1206 = vpop.permute.xlu0 %1205
    %1208 = vset.pattern.permute.xlu0 2
    %1209 = vperm.xlu0 %1208, %v643
    %v1210 = vpop.permute.xlu0 %1209
    %1212 = vset.pattern.permute.xlu0 2
    %1213 = vperm.xlu0 %1212, %v644
    %v1214 = vpop.permute.xlu0 %1213
    %1216 = vset.pattern.permute.xlu0 2
    %1217 = vperm.xlu0 %1216, %v645
    %v1218 = vpop.permute.xlu0 %1217
    %1220 = vset.pattern.permute.xlu0 2
    %1221 = vperm.xlu0 %1220, %v646
    %v1222 = vpop.permute.xlu0 %1221
    %1224 = vset.pattern.permute.xlu0 2
    %1225 = vperm.xlu0 %1224, %v647
    %v1226 = vpop.permute.xlu0 %1225
    %1228 = vset.pattern.permute.xlu0 2
    %1229 = vperm.xlu0 %1228, %v648
    %v1230 = vpop.permute.xlu0 %1229
    %1232 = vset.pattern.permute.xlu0 2
    %1233 = vperm.xlu0 %1232, %v649
    %v1234 = vpop.permute.xlu0 %1233
    %1236 = vset.pattern.permute.xlu0 2
    %1237 = vperm.xlu0 %1236, %v650
    %v1238 = vpop.permute.xlu0 %1237
    %1240 = vset.pattern.permute.xlu0 2
    %1241 = vperm.xlu0 %1240, %v651
    %v1242 = vpop.permute.xlu0 %1241
    %1244 = vset.pattern.permute.xlu0 2
    %1245 = vperm.xlu0 %1244, %v652
    %v1246 = vpop.permute.xlu0 %1245
    %1248 = vset.pattern.permute.xlu0 2
    %1249 = vperm.xlu0 %1248, %v653
    %v1250 = vpop.permute.xlu0 %1249
    %1252 = vset.pattern.permute.xlu0 2
    %1253 = vperm.xlu0 %1252, %v654
    %v1254 = vpop.permute.xlu0 %1253
    %1256 = vset.pattern.permute.xlu0 2
    %1257 = vperm.xlu0 %1256, %v655
    %v1258 = vpop.permute.xlu0 %1257
    %1260 = vset.pattern.permute.xlu0 2
    %1261 = vperm.xlu0 %1260, %v656
    %v1262 = vpop.permute.xlu0 %1261
    %1264 = vset.pattern.permute.xlu0 2
    %1265 = vperm.xlu0 %1264, %v657
    %v1266 = vpop.permute.xlu0 %1265
    %1268 = vset.pattern.permute.xlu0 2
    %1269 = vperm.xlu0 %1268, %v658
    %v1270 = vpop.permute.xlu0 %1269
    %1272 = vset.pattern.permute.xlu0 2
    %1273 = vperm.xlu0 %1272, %v659
    %v1274 = vpop.permute.xlu0 %1273
    %1276 = vset.pattern.permute.xlu0 2
    %1277 = vperm.xlu0 %1276, %v660
    %v1278 = vpop.permute.xlu0 %1277
    %v1280 = vlaneseq
    %v1281 = vshrl.u32 %v1280, 7
    %v1282 = vsub.s32 0, %v1281
    %v1283 = vrot.slane %v1127, %v1282
    %v1284 = vmul.f32 %v1130, %v1283
    %v1285 = vmul.f32 %v1134, %v1283
    %v1286 = vmul.f32 %v1138, %v1283
    %v1287 = vmul.f32 %v1142, %v1283
    %v1288 = vmul.f32 %v1146, %v1283
    %v1289 = vmul.f32 %v1150, %v1283
    %v1290 = vmul.f32 %v1154, %v1283
    %v1291 = vmul.f32 %v1158, %v1283
    %v1292 = vmul.f32 %v1162, %v1283
    %v1293 = vmul.f32 %v1166, %v1283
    %v1294 = vmul.f32 %v1170, %v1283
    %v1295 = vmul.f32 %v1174, %v1283
    %v1296 = vmul.f32 %v1178, %v1283
    %v1297 = vmul.f32 %v1182, %v1283
    %v1298 = vmul.f32 %v1186, %v1283
    %v1299 = vmul.f32 %v1190, %v1283
    %v1300 = vmul.f32 %v1194, %v1283
    %v1301 = vmul.f32 %v1198, %v1283
    %v1302 = vmul.f32 %v1202, %v1283
    %v1303 = vmul.f32 %v1206, %v1283
    %v1304 = vmul.f32 %v1210, %v1283
    %v1305 = vmul.f32 %v1214, %v1283
    %v1306 = vmul.f32 %v1218, %v1283
    %v1307 = vmul.f32 %v1222, %v1283
    %v1308 = vmul.f32 %v1226, %v1283
    %v1309 = vmul.f32 %v1230, %v1283
    %v1310 = vmul.f32 %v1234, %v1283
    %v1311 = vmul.f32 %v1238, %v1283
    %v1312 = vmul.f32 %v1242, %v1283
    %v1313 = vmul.f32 %v1246, %v1283
    %v1314 = vmul.f32 %v1250, %v1283
    %v1315 = vmul.f32 %v1254, %v1283
    %v1316 = vmul.f32 %v1258, %v1283
    %v1317 = vmul.f32 %v1262, %v1283
    %v1318 = vmul.f32 %v1266, %v1283
    %v1319 = vmul.f32 %v1270, %v1283
    %v1320 = vmul.f32 %v1274, %v1283
    %v1321 = vmul.f32 %v1278, %v1283
    %v1322 = vadd.f32 %v1089, %v1284
    %v1323 = vadd.f32 %v1090, %v1285
    %v1324 = vadd.f32 %v1091, %v1286
    %v1325 = vadd.f32 %v1092, %v1287
    %v1326 = vadd.f32 %v1093, %v1288
    %v1327 = vadd.f32 %v1094, %v1289
    %v1328 = vadd.f32 %v1095, %v1290
    %v1329 = vadd.f32 %v1096, %v1291
    %v1330 = vadd.f32 %v1097, %v1292
    %v1331 = vadd.f32 %v1098, %v1293
    %v1332 = vadd.f32 %v1099, %v1294
    %v1333 = vadd.f32 %v1100, %v1295
    %v1334 = vadd.f32 %v1101, %v1296
    %v1335 = vadd.f32 %v1102, %v1297
    %v1336 = vadd.f32 %v1103, %v1298
    %v1337 = vadd.f32 %v1104, %v1299
    %v1338 = vadd.f32 %v1105, %v1300
    %v1339 = vadd.f32 %v1106, %v1301
    %v1340 = vadd.f32 %v1107, %v1302
    %v1341 = vadd.f32 %v1108, %v1303
    %v1342 = vadd.f32 %v1109, %v1304
    %v1343 = vadd.f32 %v1110, %v1305
    %v1344 = vadd.f32 %v1111, %v1306
    %v1345 = vadd.f32 %v1112, %v1307
    %v1346 = vadd.f32 %v1113, %v1308
    %v1347 = vadd.f32 %v1114, %v1309
    %v1348 = vadd.f32 %v1115, %v1310
    %v1349 = vadd.f32 %v1116, %v1311
    %v1350 = vadd.f32 %v1117, %v1312
    %v1351 = vadd.f32 %v1118, %v1313
    %v1352 = vadd.f32 %v1119, %v1314
    %v1353 = vadd.f32 %v1120, %v1315
    %v1354 = vadd.f32 %v1121, %v1316
    %v1355 = vadd.f32 %v1122, %v1317
    %v1356 = vadd.f32 %v1123, %v1318
    %v1357 = vadd.f32 %v1124, %v1319
    %v1358 = vadd.f32 %v1125, %v1320
    %v1359 = vadd.f32 %v1126, %v1321
    %v1360 = vld [vmem:[%s1] sm:$0x1]
    %v1361 = vlaneseq
    %v1362 = vshrl.u32 %v1361, 7
    %v1363 = vsub.s32 0, %v1362
    %v1364 = vrot.slane %v1360, %v1363
    %v1365 = vadd.f32 %v1322, %v1364
    %v1366 = vadd.f32 %v1323, %v1364
    %v1367 = vadd.f32 %v1324, %v1364
    %v1368 = vadd.f32 %v1325, %v1364
    %v1369 = vadd.f32 %v1326, %v1364
    %v1370 = vadd.f32 %v1327, %v1364
    %v1371 = vadd.f32 %v1328, %v1364
    %v1372 = vadd.f32 %v1329, %v1364
    %v1373 = vadd.f32 %v1330, %v1364
    %v1374 = vadd.f32 %v1331, %v1364
    %v1375 = vadd.f32 %v1332, %v1364
    %v1376 = vadd.f32 %v1333, %v1364
    %v1377 = vadd.f32 %v1334, %v1364
    %v1378 = vadd.f32 %v1335, %v1364
    %v1379 = vadd.f32 %v1336, %v1364
    %v1380 = vadd.f32 %v1337, %v1364
    %v1381 = vadd.f32 %v1338, %v1364
    %v1382 = vadd.f32 %v1339, %v1364
    %v1383 = vadd.f32 %v1340, %v1364
    %v1384 = vadd.f32 %v1341, %v1364
    %v1385 = vadd.f32 %v1342, %v1364
    %v1386 = vadd.f32 %v1343, %v1364
    %v1387 = vadd.f32 %v1344, %v1364
    %v1388 = vadd.f32 %v1345, %v1364
    %v1389 = vadd.f32 %v1346, %v1364
    %v1390 = vadd.f32 %v1347, %v1364
    %v1391 = vadd.f32 %v1348, %v1364
    %v1392 = vadd.f32 %v1349, %v1364
    %v1393 = vadd.f32 %v1350, %v1364
    %v1394 = vadd.f32 %v1351, %v1364
    %v1395 = vadd.f32 %v1352, %v1364
    %v1396 = vadd.f32 %v1353, %v1364
    %v1397 = vadd.f32 %v1354, %v1364
    %v1398 = vadd.f32 %v1355, %v1364
    %v1399 = vadd.f32 %v1356, %v1364
    %v1400 = vadd.f32 %v1357, %v1364
    %v1401 = vadd.f32 %v1358, %v1364
    %v1402 = vadd.f32 %v1359, %v1364
    %v1403 = vmax.f32 %v1365, 0.0
    %v1404 = vmax.f32 %v1366, 0.0
    %v1405 = vmax.f32 %v1367, 0.0
    %v1406 = vmax.f32 %v1368, 0.0
    %v1407 = vmax.f32 %v1369, 0.0
    %v1408 = vmax.f32 %v1370, 0.0
    %v1409 = vmax.f32 %v1371, 0.0
    %v1410 = vmax.f32 %v1372, 0.0
    %v1411 = vmax.f32 %v1373, 0.0
    %v1412 = vmax.f32 %v1374, 0.0
    %v1413 = vmax.f32 %v1375, 0.0
    %v1414 = vmax.f32 %v1376, 0.0
    %v1415 = vmax.f32 %v1377, 0.0
    %v1416 = vmax.f32 %v1378, 0.0
    %v1417 = vmax.f32 %v1379, 0.0
    %v1418 = vmax.f32 %v1380, 0.0
    %v1419 = vmax.f32 %v1381, 0.0
    %v1420 = vmax.f32 %v1382, 0.0
    %v1421 = vmax.f32 %v1383, 0.0
    %v1422 = vmax.f32 %v1384, 0.0
    %v1423 = vmax.f32 %v1385, 0.0
    %v1424 = vmax.f32 %v1386, 0.0
    %v1425 = vmax.f32 %v1387, 0.0
    %v1426 = vmax.f32 %v1388, 0.0
    %v1427 = vmax.f32 %v1389, 0.0
    %v1428 = vmax.f32 %v1390, 0.0
    %v1429 = vmax.f32 %v1391, 0.0
    %v1430 = vmax.f32 %v1392, 0.0
    %v1431 = vmax.f32 %v1393, 0.0
    %v1432 = vmax.f32 %v1394, 0.0
    %v1433 = vmax.f32 %v1395, 0.0
    %v1434 = vmax.f32 %v1396, 0.0
    %v1435 = vmax.f32 %v1397, 0.0
    %v1436 = vmax.f32 %v1398, 0.0
    %v1437 = vmax.f32 %v1399, 0.0
    %v1438 = vmax.f32 %v1400, 0.0
    %v1439 = vmax.f32 %v1401, 0.0
    %v1440 = vmax.f32 %v1402, 0.0
    %v1441 = vpack.c.bf16 %v1404, %v1403
    %v1442 = vpack.c.bf16 %v1406, %v1405
    %v1443 = vpack.c.bf16 %v1408, %v1407
    %v1444 = vpack.c.bf16 %v1410, %v1409
    %v1445 = vpack.c.bf16 %v1412, %v1411
    %v1446 = vpack.c.bf16 %v1414, %v1413
    %v1447 = vpack.c.bf16 %v1416, %v1415
    %v1448 = vpack.c.bf16 %v1418, %v1417
    %v1449 = vpack.c.bf16 %v1420, %v1419
    %v1450 = vpack.c.bf16 %v1422, %v1421
    %v1451 = vpack.c.bf16 %v1424, %v1423
    %v1452 = vpack.c.bf16 %v1426, %v1425
    %v1453 = vpack.c.bf16 %v1428, %v1427
    %v1454 = vpack.c.bf16 %v1430, %v1429
    %v1455 = vpack.c.bf16 %v1432, %v1431
    %v1456 = vpack.c.bf16 %v1434, %v1433
    %v1457 = vpack.c.bf16 %v1436, %v1435
    %v1458 = vpack.c.bf16 %v1438, %v1437
    %v1459 = vpack.c.bf16 %v1440, %v1439
    %v1460 = vld [vmem:[%s0] sm:$0xf]
    %v1461 = vld [vmem:[%s0 + $0x4] sm:$0xf]
    %v1462 = vld [vmem:[%s0 + $0x8] sm:$0xf]
    %v1463 = vld [vmem:[%s0 + $0xc] sm:$0xf]
    %v1464 = vld [vmem:[%s0 + $0x10] sm:$0xf]
    %v1465 = vld [vmem:[%s0 + $0x14] sm:$0xf]
    %v1466 = vld [vmem:[%s0 + $0x18] sm:$0xf]
    %v1467 = vld [vmem:[%s0 + $0x1c] sm:$0xf]
    %v1468 = vld [vmem:[%s0 + $0x20] sm:$0xf]
    %v1469 = vld [vmem:[%s0 + $0x24] sm:$0xf]
    %v1470 = vld [vmem:[%s0 + $0x28] sm:$0xf]
    %v1471 = vld [vmem:[%s0 + $0x2c] sm:$0xf]
    %v1472 = vld [vmem:[%s0 + $0x30] sm:$0xf]
    %v1473 = vld [vmem:[%s0 + $0x34] sm:$0xf]
    %v1474 = vld [vmem:[%s0 + $0x38] sm:$0xf]
    %v1475 = vld [vmem:[%s0 + $0x3c] sm:$0xf]
    %v1476 = vld [vmem:[%s1 + $0x1] sm:$0x1]
    %v1477 = vlaneseq
    %v1478 = vshrl.u32 %v1477, 7
    %v1479 = vsub.s32 0, %v1478
    %v1480 = vrot.slane %v1476, %v1479
    %v1497 = vunpack.c.l.b16 %v1460
    %v1498 = vunpack.c.l.b16 %v1461
    %v1499 = vunpack.c.l.b16 %v1462
    %v1500 = vunpack.c.l.b16 %v1463
    %v1501 = vunpack.c.l.b16 %v1464
    %v1502 = vunpack.c.l.b16 %v1465
    %v1503 = vunpack.c.l.b16 %v1466
    %v1504 = vunpack.c.l.b16 %v1467
    %v1505 = vunpack.c.l.b16 %v1468
    %v1506 = vunpack.c.l.b16 %v1469
    %v1507 = vunpack.c.l.b16 %v1470
    %v1508 = vunpack.c.l.b16 %v1471
    %v1509 = vunpack.c.l.b16 %v1472
    %v1510 = vunpack.c.l.b16 %v1473
    %v1511 = vunpack.c.l.b16 %v1474
    %v1512 = vunpack.c.l.b16 %v1475
    %v1513 = vpack.c.b16 %v1498, %v1497
    %v1514 = vpack.c.b16 %v1500, %v1499
    %v1515 = vpack.c.b16 %v1502, %v1501
    %v1516 = vpack.c.b16 %v1504, %v1503
    %v1517 = vpack.c.b16 %v1506, %v1505
    %v1518 = vpack.c.b16 %v1508, %v1507
    %v1519 = vpack.c.b16 %v1510, %v1509
    %v1520 = vpack.c.b16 %v1512, %v1511
    %1529 = vmatprep.subr.bf16.mxu0 0
    %1530 = vmatpush1.bf16.msra.mxu0 %v1520
    %1531 = vmatprep.subr.bf16.mxu0 0
    %1532 = vmatpush1.bf16.msra.mxu0 %v1519
    %1533 = vmatprep.subr.bf16.mxu0 0
    %1534 = vmatpush1.bf16.msra.mxu0 %v1518
    %1535 = vmatprep.subr.bf16.mxu0 0
    %1536 = vmatpush1.bf16.msra.mxu0 %v1517
    %1537 = vmatprep.subr.bf16.mxu0 0
    %1538 = vmatpush1.bf16.msra.mxu0 %v1516
    %1539 = vmatprep.subr.bf16.mxu0 0
    %1540 = vmatpush1.bf16.msra.mxu0 %v1515
    %1541 = vmatprep.subr.bf16.mxu0 0
    %1542 = vmatpush1.bf16.msra.mxu0 %v1514
    %1543 = vmatprep.subr.bf16.mxu0 0
    %1544 = vmatpush1.bf16.msra.mxu0 %v1513
    %1545 = vmatprep.subr.bf16.mxu0 0
    %1546 = vmatpush2.bf16.msra.mxu0 0
    %1547 = vmatprep.subr.bf16.mxu0 0
    %1548 = vmatpush2.bf16.msra.mxu0 0
    %1549 = vmatprep.subr.bf16.mxu0 0
    %1550 = vmatpush2.bf16.msra.mxu0 0
    %1551 = vmatprep.subr.bf16.mxu0 0
    %1552 = vmatpush2.bf16.msra.mxu0 0
    %1553 = vmatprep.subr.bf16.mxu0 0
    %1554 = vmatpush2.bf16.msra.mxu0 0
    %1555 = vmatprep.subr.bf16.mxu0 0
    %1556 = vmatpush2.bf16.msra.mxu0 0
    %1557 = vmatprep.subr.bf16.mxu0 0
    %1558 = vmatpush2.bf16.msra.mxu0 0
    %1559 = vmatprep.subr.bf16.mxu0 0
    %1560 = vmatpush2.bf16.msra.mxu0 0
    %1561 = vmatprep.mubr.bf16.mxu0 0
    %1562 = vmatmul.mubr.bf16.gmra.mxu0 %v1441
    %v1563 = vpop.f32.mrf.mxu0
    %v1564 = vadd.f32 %v1480, %v1563
    %v1565 = vpop.f32.mrf.mxu0
    %v1566 = vpop.f32.mrf.mxu0
    %v1567 = vadd.f32 %v1480, %v1566
    %v1568 = vpop.f32.mrf.mxu0
    %1569 = vmatprep.mubr.bf16.mxu0 0
    %1570 = vmatmul.mubr.bf16.gmra.mxu0 %v1442
    %v1571 = vpop.f32.mrf.mxu0
    %v1572 = vadd.f32 %v1480, %v1571
    %v1573 = vpop.f32.mrf.mxu0
    %v1574 = vpop.f32.mrf.mxu0
    %v1575 = vadd.f32 %v1480, %v1574
    %v1576 = vpop.f32.mrf.mxu0
    %1577 = vmatprep.mubr.bf16.mxu0 0
    %1578 = vmatmul.mubr.bf16.gmra.mxu0 %v1443
    %v1579 = vpop.f32.mrf.mxu0
    %v1580 = vadd.f32 %v1480, %v1579
    %v1581 = vpop.f32.mrf.mxu0
    %v1582 = vpop.f32.mrf.mxu0
    %v1583 = vadd.f32 %v1480, %v1582
    %v1584 = vpop.f32.mrf.mxu0
    %1585 = vmatprep.mubr.bf16.mxu0 0
    %1586 = vmatmul.mubr.bf16.gmra.mxu0 %v1444
    %v1587 = vpop.f32.mrf.mxu0
    %v1588 = vadd.f32 %v1480, %v1587
    %v1589 = vpop.f32.mrf.mxu0
    %v1590 = vpop.f32.mrf.mxu0
    %v1591 = vadd.f32 %v1480, %v1590
    %v1592 = vpop.f32.mrf.mxu0
    %1593 = vmatprep.mubr.bf16.mxu0 0
    %1594 = vmatmul.mubr.bf16.gmra.mxu0 %v1445
    %v1595 = vpop.f32.mrf.mxu0
    %v1596 = vadd.f32 %v1480, %v1595
    %v1597 = vpop.f32.mrf.mxu0
    %v1598 = vpop.f32.mrf.mxu0
    %v1599 = vadd.f32 %v1480, %v1598
    %v1600 = vpop.f32.mrf.mxu0
    %1601 = vmatprep.mubr.bf16.mxu0 0
    %1602 = vmatmul.mubr.bf16.gmra.mxu0 %v1446
    %v1603 = vpop.f32.mrf.mxu0
    %v1604 = vadd.f32 %v1480, %v1603
    %v1605 = vpop.f32.mrf.mxu0
    %v1606 = vpop.f32.mrf.mxu0
    %v1607 = vadd.f32 %v1480, %v1606
    %v1608 = vpop.f32.mrf.mxu0
    %1609 = vmatprep.mubr.bf16.mxu0 0
    %1610 = vmatmul.mubr.bf16.gmra.mxu0 %v1447
    %v1611 = vpop.f32.mrf.mxu0
    %v1612 = vadd.f32 %v1480, %v1611
    %v1613 = vpop.f32.mrf.mxu0
    %v1614 = vpop.f32.mrf.mxu0
    %v1615 = vadd.f32 %v1480, %v1614
    %v1616 = vpop.f32.mrf.mxu0
    %1617 = vmatprep.mubr.bf16.mxu0 0
    %1618 = vmatmul.mubr.bf16.gmra.mxu0 %v1448
    %v1619 = vpop.f32.mrf.mxu0
    %v1620 = vadd.f32 %v1480, %v1619
    %v1621 = vpop.f32.mrf.mxu0
    %v1622 = vpop.f32.mrf.mxu0
    %v1623 = vadd.f32 %v1480, %v1622
    %v1624 = vpop.f32.mrf.mxu0
    %1625 = vmatprep.mubr.bf16.mxu0 0
    %1626 = vmatmul.mubr.bf16.gmra.mxu0 %v1449
    %v1627 = vpop.f32.mrf.mxu0
    %v1628 = vadd.f32 %v1480, %v1627
    %v1629 = vpop.f32.mrf.mxu0
    %v1630 = vpop.f32.mrf.mxu0
    %v1631 = vadd.f32 %v1480, %v1630
    %v1632 = vpop.f32.mrf.mxu0
    %1633 = vmatprep.mubr.bf16.mxu0 0
    %1634 = vmatmul.mubr.bf16.gmra.mxu0 %v1450
    %v1635 = vpop.f32.mrf.mxu0
    %v1636 = vadd.f32 %v1480, %v1635
    %v1637 = vpop.f32.mrf.mxu0
    %v1638 = vpop.f32.mrf.mxu0
    %v1639 = vadd.f32 %v1480, %v1638
    %v1640 = vpop.f32.mrf.mxu0
    %1641 = vmatprep.mubr.bf16.mxu0 0
    %1642 = vmatmul.mubr.bf16.gmra.mxu0 %v1451
    %v1643 = vpop.f32.mrf.mxu0
    %v1644 = vadd.f32 %v1480, %v1643
    %v1645 = vpop.f32.mrf.mxu0
    %v1646 = vpop.f32.mrf.mxu0
    %v1647 = vadd.f32 %v1480, %v1646
    %v1648 = vpop.f32.mrf.mxu0
    %1649 = vmatprep.mubr.bf16.mxu0 0
    %1650 = vmatmul.mubr.bf16.gmra.mxu0 %v1452
    %v1651 = vpop.f32.mrf.mxu0
    %v1652 = vadd.f32 %v1480, %v1651
    %v1653 = vpop.f32.mrf.mxu0
    %v1654 = vpop.f32.mrf.mxu0
    %v1655 = vadd.f32 %v1480, %v1654
    %v1656 = vpop.f32.mrf.mxu0
    %1657 = vmatprep.mubr.bf16.mxu0 0
    %1658 = vmatmul.mubr.bf16.gmra.mxu0 %v1453
    %v1659 = vpop.f32.mrf.mxu0
    %v1660 = vadd.f32 %v1480, %v1659
    %v1661 = vpop.f32.mrf.mxu0
    %v1662 = vpop.f32.mrf.mxu0
    %v1663 = vadd.f32 %v1480, %v1662
    %v1664 = vpop.f32.mrf.mxu0
    %1665 = vmatprep.mubr.bf16.mxu0 0
    %1666 = vmatmul.mubr.bf16.gmra.mxu0 %v1454
    %v1667 = vpop.f32.mrf.mxu0
    %v1668 = vadd.f32 %v1480, %v1667
    %v1669 = vpop.f32.mrf.mxu0
    %v1670 = vpop.f32.mrf.mxu0
    %v1671 = vadd.f32 %v1480, %v1670
    %v1672 = vpop.f32.mrf.mxu0
    %1673 = vmatprep.mubr.bf16.mxu0 0
    %1674 = vmatmul.mubr.bf16.gmra.mxu0 %v1455
    %v1675 = vpop.f32.mrf.mxu0
    %v1676 = vadd.f32 %v1480, %v1675
    %v1677 = vpop.f32.mrf.mxu0
    %v1678 = vpop.f32.mrf.mxu0
    %v1679 = vadd.f32 %v1480, %v1678
    %v1680 = vpop.f32.mrf.mxu0
    %1681 = vmatprep.mubr.bf16.mxu0 0
    %1682 = vmatmul.mubr.bf16.gmra.mxu0 %v1456
    %v1683 = vpop.f32.mrf.mxu0
    %v1684 = vadd.f32 %v1480, %v1683
    %v1685 = vpop.f32.mrf.mxu0
    %v1686 = vpop.f32.mrf.mxu0
    %v1687 = vadd.f32 %v1480, %v1686
    %v1688 = vpop.f32.mrf.mxu0
    %1689 = vmatprep.mubr.bf16.mxu0 0
    %1690 = vmatmul.mubr.bf16.gmra.mxu0 %v1457
    %v1691 = vpop.f32.mrf.mxu0
    %v1692 = vadd.f32 %v1480, %v1691
    %v1693 = vpop.f32.mrf.mxu0
    %v1694 = vpop.f32.mrf.mxu0
    %v1695 = vadd.f32 %v1480, %v1694
    %v1696 = vpop.f32.mrf.mxu0
    %1697 = vmatprep.mubr.bf16.mxu0 0
    %1698 = vmatmul.mubr.bf16.gmra.mxu0 %v1458
    %v1699 = vpop.f32.mrf.mxu0
    %v1700 = vadd.f32 %v1480, %v1699
    %v1701 = vpop.f32.mrf.mxu0
    %v1702 = vpop.f32.mrf.mxu0
    %v1703 = vadd.f32 %v1480, %v1702
    %v1704 = vpop.f32.mrf.mxu0
    %1705 = vmatprep.mubr.bf16.mxu0 0
    %1706 = vmatmul.mubr.bf16.gmra.mxu0 %v1459
    %v1707 = vpop.f32.mrf.mxu0
    %v1708 = vadd.f32 %v1480, %v1707
    %v1709 = vpop.f32.mrf.mxu0
    %v1710 = vpop.f32.mrf.mxu0
    %v1711 = vadd.f32 %v1480, %v1710
    %v1712 = vpop.f32.mrf.mxu0
    %1713 = vdwg.mxu0
    %v1714 = vmax.f32 %v1564, 0.0
    %v1715 = vmax.f32 %v1567, 0.0
    %v1716 = vmax.f32 %v1572, 0.0
    %v1717 = vmax.f32 %v1575, 0.0
    %v1718 = vmax.f32 %v1580, 0.0
    %v1719 = vmax.f32 %v1583, 0.0
    %v1720 = vmax.f32 %v1588, 0.0
    %v1721 = vmax.f32 %v1591, 0.0
    %v1722 = vmax.f32 %v1596, 0.0
    %v1723 = vmax.f32 %v1599, 0.0
    %v1724 = vmax.f32 %v1604, 0.0
    %v1725 = vmax.f32 %v1607, 0.0
    %v1726 = vmax.f32 %v1612, 0.0
    %v1727 = vmax.f32 %v1615, 0.0
    %v1728 = vmax.f32 %v1620, 0.0
    %v1729 = vmax.f32 %v1623, 0.0
    %v1730 = vmax.f32 %v1628, 0.0
    %v1731 = vmax.f32 %v1631, 0.0
    %v1732 = vmax.f32 %v1636, 0.0
    %v1733 = vmax.f32 %v1639, 0.0
    %v1734 = vmax.f32 %v1644, 0.0
    %v1735 = vmax.f32 %v1647, 0.0
    %v1736 = vmax.f32 %v1652, 0.0
    %v1737 = vmax.f32 %v1655, 0.0
    %v1738 = vmax.f32 %v1660, 0.0
    %v1739 = vmax.f32 %v1663, 0.0
    %v1740 = vmax.f32 %v1668, 0.0
    %v1741 = vmax.f32 %v1671, 0.0
    %v1742 = vmax.f32 %v1676, 0.0
    %v1743 = vmax.f32 %v1679, 0.0
    %v1744 = vmax.f32 %v1684, 0.0
    %v1745 = vmax.f32 %v1687, 0.0
    %v1746 = vmax.f32 %v1692, 0.0
    %v1747 = vmax.f32 %v1695, 0.0
    %v1748 = vmax.f32 %v1700, 0.0
    %v1749 = vmax.f32 %v1703, 0.0
    %v1750 = vmax.f32 %v1708, 0.0
    %v1751 = vmax.f32 %v1711, 0.0
    %v1752 = vpack.c.bf16 %v1715, %v1714
    %v1753 = vpack.c.bf16 %v1717, %v1716
    %v1754 = vpack.c.bf16 %v1719, %v1718
    %v1755 = vpack.c.bf16 %v1721, %v1720
    %v1756 = vpack.c.bf16 %v1723, %v1722
    %v1757 = vpack.c.bf16 %v1725, %v1724
    %v1758 = vpack.c.bf16 %v1727, %v1726
    %v1759 = vpack.c.bf16 %v1729, %v1728
    %v1760 = vpack.c.bf16 %v1731, %v1730
    %v1761 = vpack.c.bf16 %v1733, %v1732
    %v1762 = vpack.c.bf16 %v1735, %v1734
    %v1763 = vpack.c.bf16 %v1737, %v1736
    %v1764 = vpack.c.bf16 %v1739, %v1738
    %v1765 = vpack.c.bf16 %v1741, %v1740
    %v1766 = vpack.c.bf16 %v1743, %v1742
    %v1767 = vpack.c.bf16 %v1745, %v1744
    %v1768 = vpack.c.bf16 %v1747, %v1746
    %v1769 = vpack.c.bf16 %v1749, %v1748
    %v1770 = vpack.c.bf16 %v1751, %v1750
    %v1771 = vld [vmem:[%s0 + $0x40] sm:$0xf]
    %v1772 = vld [vmem:[%s0 + $0x44] sm:$0xf]
    %v1773 = vld [vmem:[%s0 + $0x48] sm:$0xf]
    %v1774 = vld [vmem:[%s0 + $0x4c] sm:$0xf]
    %v1775 = vld [vmem:[%s0 + $0x50] sm:$0xf]
    %v1776 = vld [vmem:[%s0 + $0x54] sm:$0xf]
    %v1777 = vld [vmem:[%s0 + $0x58] sm:$0xf]
    %v1778 = vld [vmem:[%s0 + $0x5c] sm:$0xf]
    %v1779 = vld [vmem:[%s0 + $0x60] sm:$0xf]
    %v1780 = vld [vmem:[%s0 + $0x64] sm:$0xf]
    %v1781 = vld [vmem:[%s0 + $0x68] sm:$0xf]
    %v1782 = vld [vmem:[%s0 + $0x6c] sm:$0xf]
    %v1783 = vld [vmem:[%s0 + $0x70] sm:$0xf]
    %v1784 = vld [vmem:[%s0 + $0x74] sm:$0xf]
    %v1785 = vld [vmem:[%s0 + $0x78] sm:$0xf]
    %v1786 = vld [vmem:[%s0 + $0x7c] sm:$0xf]
    %v1787 = vld [vmem:[%s1 + $0x2] sm:$0x1]
    %v1788 = vlaneseq
    %v1789 = vshrl.u32 %v1788, 7
    %v1790 = vsub.s32 0, %v1789
    %v1791 = vrot.slane %v1787, %v1790
    %v1808 = vunpack.c.l.b16 %v1771
    %v1809 = vunpack.c.l.b16 %v1772
    %v1810 = vunpack.c.l.b16 %v1773
    %v1811 = vunpack.c.l.b16 %v1774
    %v1812 = vunpack.c.l.b16 %v1775
    %v1813 = vunpack.c.l.b16 %v1776
    %v1814 = vunpack.c.l.b16 %v1777
    %v1815 = vunpack.c.l.b16 %v1778
    %v1816 = vunpack.c.l.b16 %v1779
    %v1817 = vunpack.c.l.b16 %v1780
    %v1818 = vunpack.c.l.b16 %v1781
    %v1819 = vunpack.c.l.b16 %v1782
    %v1820 = vunpack.c.l.b16 %v1783
    %v1821 = vunpack.c.l.b16 %v1784
    %v1822 = vunpack.c.l.b16 %v1785
    %v1823 = vunpack.c.l.b16 %v1786
    %v1824 = vpack.c.b16 %v1809, %v1808
    %v1825 = vpack.c.b16 %v1811, %v1810
    %v1826 = vpack.c.b16 %v1813, %v1812
    %v1827 = vpack.c.b16 %v1815, %v1814
    %v1828 = vpack.c.b16 %v1817, %v1816
    %v1829 = vpack.c.b16 %v1819, %v1818
    %v1830 = vpack.c.b16 %v1821, %v1820
    %v1831 = vpack.c.b16 %v1823, %v1822
    %1840 = vmatprep.subr.bf16.mxu0 0
    %1841 = vmatpush1.bf16.msra.mxu0 %v1831
    %1842 = vmatprep.subr.bf16.mxu0 0
    %1843 = vmatpush1.bf16.msra.mxu0 %v1830
    %1844 = vmatprep.subr.bf16.mxu0 0
    %1845 = vmatpush1.bf16.msra.mxu0 %v1829
    %1846 = vmatprep.subr.bf16.mxu0 0
    %1847 = vmatpush1.bf16.msra.mxu0 %v1828
    %1848 = vmatprep.subr.bf16.mxu0 0
    %1849 = vmatpush1.bf16.msra.mxu0 %v1827
    %1850 = vmatprep.subr.bf16.mxu0 0
    %1851 = vmatpush1.bf16.msra.mxu0 %v1826
    %1852 = vmatprep.subr.bf16.mxu0 0
    %1853 = vmatpush1.bf16.msra.mxu0 %v1825
    %1854 = vmatprep.subr.bf16.mxu0 0
    %1855 = vmatpush1.bf16.msra.mxu0 %v1824
    %1856 = vmatprep.subr.bf16.mxu0 0
    %1857 = vmatpush2.bf16.msra.mxu0 0
    %1858 = vmatprep.subr.bf16.mxu0 0
    %1859 = vmatpush2.bf16.msra.mxu0 0
    %1860 = vmatprep.subr.bf16.mxu0 0
    %1861 = vmatpush2.bf16.msra.mxu0 0
    %1862 = vmatprep.subr.bf16.mxu0 0
    %1863 = vmatpush2.bf16.msra.mxu0 0
    %1864 = vmatprep.subr.bf16.mxu0 0
    %1865 = vmatpush2.bf16.msra.mxu0 0
    %1866 = vmatprep.subr.bf16.mxu0 0
    %1867 = vmatpush2.bf16.msra.mxu0 0
    %1868 = vmatprep.subr.bf16.mxu0 0
    %1869 = vmatpush2.bf16.msra.mxu0 0
    %1870 = vmatprep.subr.bf16.mxu0 0
    %1871 = vmatpush2.bf16.msra.mxu0 0
    %1872 = vmatprep.mubr.bf16.mxu0 0
    %1873 = vmatmul.mubr.bf16.gmra.mxu0 %v1752
    %v1874 = vpop.f32.mrf.mxu0
    %v1875 = vadd.f32 %v1791, %v1874
    %v1876 = vpop.f32.mrf.mxu0
    %v1877 = vpop.f32.mrf.mxu0
    %v1878 = vadd.f32 %v1791, %v1877
    %v1879 = vpop.f32.mrf.mxu0
    %1880 = vmatprep.mubr.bf16.mxu0 0
    %1881 = vmatmul.mubr.bf16.gmra.mxu0 %v1753
    %v1882 = vpop.f32.mrf.mxu0
    %v1883 = vadd.f32 %v1791, %v1882
    %v1884 = vpop.f32.mrf.mxu0
    %v1885 = vpop.f32.mrf.mxu0
    %v1886 = vadd.f32 %v1791, %v1885
    %v1887 = vpop.f32.mrf.mxu0
    %1888 = vmatprep.mubr.bf16.mxu0 0
    %1889 = vmatmul.mubr.bf16.gmra.mxu0 %v1754
    %v1890 = vpop.f32.mrf.mxu0
    %v1891 = vadd.f32 %v1791, %v1890
    %v1892 = vpop.f32.mrf.mxu0
    %v1893 = vpop.f32.mrf.mxu0
    %v1894 = vadd.f32 %v1791, %v1893
    %v1895 = vpop.f32.mrf.mxu0
    %1896 = vmatprep.mubr.bf16.mxu0 0
    %1897 = vmatmul.mubr.bf16.gmra.mxu0 %v1755
    %v1898 = vpop.f32.mrf.mxu0
    %v1899 = vadd.f32 %v1791, %v1898
    %v1900 = vpop.f32.mrf.mxu0
    %v1901 = vpop.f32.mrf.mxu0
    %v1902 = vadd.f32 %v1791, %v1901
    %v1903 = vpop.f32.mrf.mxu0
    %1904 = vmatprep.mubr.bf16.mxu0 0
    %1905 = vmatmul.mubr.bf16.gmra.mxu0 %v1756
    %v1906 = vpop.f32.mrf.mxu0
    %v1907 = vadd.f32 %v1791, %v1906
    %v1908 = vpop.f32.mrf.mxu0
    %v1909 = vpop.f32.mrf.mxu0
    %v1910 = vadd.f32 %v1791, %v1909
    %v1911 = vpop.f32.mrf.mxu0
    %1912 = vmatprep.mubr.bf16.mxu0 0
    %1913 = vmatmul.mubr.bf16.gmra.mxu0 %v1757
    %v1914 = vpop.f32.mrf.mxu0
    %v1915 = vadd.f32 %v1791, %v1914
    %v1916 = vpop.f32.mrf.mxu0
    %v1917 = vpop.f32.mrf.mxu0
    %v1918 = vadd.f32 %v1791, %v1917
    %v1919 = vpop.f32.mrf.mxu0
    %1920 = vmatprep.mubr.bf16.mxu0 0
    %1921 = vmatmul.mubr.bf16.gmra.mxu0 %v1758
    %v1922 = vpop.f32.mrf.mxu0
    %v1923 = vadd.f32 %v1791, %v1922
    %v1924 = vpop.f32.mrf.mxu0
    %v1925 = vpop.f32.mrf.mxu0
    %v1926 = vadd.f32 %v1791, %v1925
    %v1927 = vpop.f32.mrf.mxu0
    %1928 = vmatprep.mubr.bf16.mxu0 0
    %1929 = vmatmul.mubr.bf16.gmra.mxu0 %v1759
    %v1930 = vpop.f32.mrf.mxu0
    %v1931 = vadd.f32 %v1791, %v1930
    %v1932 = vpop.f32.mrf.mxu0
    %v1933 = vpop.f32.mrf.mxu0
    %v1934 = vadd.f32 %v1791, %v1933
    %v1935 = vpop.f32.mrf.mxu0
    %1936 = vmatprep.mubr.bf16.mxu0 0
    %1937 = vmatmul.mubr.bf16.gmra.mxu0 %v1760
    %v1938 = vpop.f32.mrf.mxu0
    %v1939 = vadd.f32 %v1791, %v1938
    %v1940 = vpop.f32.mrf.mxu0
    %v1941 = vpop.f32.mrf.mxu0
    %v1942 = vadd.f32 %v1791, %v1941
    %v1943 = vpop.f32.mrf.mxu0
    %1944 = vmatprep.mubr.bf16.mxu0 0
    %1945 = vmatmul.mubr.bf16.gmra.mxu0 %v1761
    %v1946 = vpop.f32.mrf.mxu0
    %v1947 = vadd.f32 %v1791, %v1946
    %v1948 = vpop.f32.mrf.mxu0
    %v1949 = vpop.f32.mrf.mxu0
    %v1950 = vadd.f32 %v1791, %v1949
    %v1951 = vpop.f32.mrf.mxu0
    %1952 = vmatprep.mubr.bf16.mxu0 0
    %1953 = vmatmul.mubr.bf16.gmra.mxu0 %v1762
    %v1954 = vpop.f32.mrf.mxu0
    %v1955 = vadd.f32 %v1791, %v1954
    %v1956 = vpop.f32.mrf.mxu0
    %v1957 = vpop.f32.mrf.mxu0
    %v1958 = vadd.f32 %v1791, %v1957
    %v1959 = vpop.f32.mrf.mxu0
    %1960 = vmatprep.mubr.bf16.mxu0 0
    %1961 = vmatmul.mubr.bf16.gmra.mxu0 %v1763
    %v1962 = vpop.f32.mrf.mxu0
    %v1963 = vadd.f32 %v1791, %v1962
    %v1964 = vpop.f32.mrf.mxu0
    %v1965 = vpop.f32.mrf.mxu0
    %v1966 = vadd.f32 %v1791, %v1965
    %v1967 = vpop.f32.mrf.mxu0
    %1968 = vmatprep.mubr.bf16.mxu0 0
    %1969 = vmatmul.mubr.bf16.gmra.mxu0 %v1764
    %v1970 = vpop.f32.mrf.mxu0
    %v1971 = vadd.f32 %v1791, %v1970
    %v1972 = vpop.f32.mrf.mxu0
    %v1973 = vpop.f32.mrf.mxu0
    %v1974 = vadd.f32 %v1791, %v1973
    %v1975 = vpop.f32.mrf.mxu0
    %1976 = vmatprep.mubr.bf16.mxu0 0
    %1977 = vmatmul.mubr.bf16.gmra.mxu0 %v1765
    %v1978 = vpop.f32.mrf.mxu0
    %v1979 = vadd.f32 %v1791, %v1978
    %v1980 = vpop.f32.mrf.mxu0
    %v1981 = vpop.f32.mrf.mxu0
    %v1982 = vadd.f32 %v1791, %v1981
    %v1983 = vpop.f32.mrf.mxu0
    %1984 = vmatprep.mubr.bf16.mxu0 0
    %1985 = vmatmul.mubr.bf16.gmra.mxu0 %v1766
    %v1986 = vpop.f32.mrf.mxu0
    %v1987 = vadd.f32 %v1791, %v1986
    %v1988 = vpop.f32.mrf.mxu0
    %v1989 = vpop.f32.mrf.mxu0
    %v1990 = vadd.f32 %v1791, %v1989
    %v1991 = vpop.f32.mrf.mxu0
    %1992 = vmatprep.mubr.bf16.mxu0 0
    %1993 = vmatmul.mubr.bf16.gmra.mxu0 %v1767
    %v1994 = vpop.f32.mrf.mxu0
    %v1995 = vadd.f32 %v1791, %v1994
    %v1996 = vpop.f32.mrf.mxu0
    %v1997 = vpop.f32.mrf.mxu0
    %v1998 = vadd.f32 %v1791, %v1997
    %v1999 = vpop.f32.mrf.mxu0
    %2000 = vmatprep.mubr.bf16.mxu0 0
    %2001 = vmatmul.mubr.bf16.gmra.mxu0 %v1768
    %v2002 = vpop.f32.mrf.mxu0
    %v2003 = vadd.f32 %v1791, %v2002
    %v2004 = vpop.f32.mrf.mxu0
    %v2005 = vpop.f32.mrf.mxu0
    %v2006 = vadd.f32 %v1791, %v2005
    %v2007 = vpop.f32.mrf.mxu0
    %2008 = vmatprep.mubr.bf16.mxu0 0
    %2009 = vmatmul.mubr.bf16.gmra.mxu0 %v1769
    %v2010 = vpop.f32.mrf.mxu0
    %v2011 = vadd.f32 %v1791, %v2010
    %v2012 = vpop.f32.mrf.mxu0
    %v2013 = vpop.f32.mrf.mxu0
    %v2014 = vadd.f32 %v1791, %v2013
    %v2015 = vpop.f32.mrf.mxu0
    %2016 = vmatprep.mubr.bf16.mxu0 0
    %2017 = vmatmul.mubr.bf16.gmra.mxu0 %v1770
    %v2018 = vpop.f32.mrf.mxu0
    %v2019 = vadd.f32 %v1791, %v2018
    %v2020 = vpop.f32.mrf.mxu0
    %v2021 = vpop.f32.mrf.mxu0
    %v2022 = vadd.f32 %v1791, %v2021
    %v2023 = vpop.f32.mrf.mxu0
    %2024 = vdwg.mxu0
    %vm2025 = vcmask 64512
    %2026 = vst.msk [vmem:[%s4] sm:$0xff] %vm2025, %v1875
    %2027 = vst.msk [vmem:[%s4 + $0x8] sm:$0xff] %vm2025, %v1878
    %2028 = vst.msk [vmem:[%s4 + $0x10] sm:$0xff] %vm2025, %v1883
    %2029 = vst.msk [vmem:[%s4 + $0x18] sm:$0xff] %vm2025, %v1886
    %2030 = vst.msk [vmem:[%s4 + $0x20] sm:$0xff] %vm2025, %v1891
    %2031 = vst.msk [vmem:[%s4 + $0x28] sm:$0xff] %vm2025, %v1894
    %2032 = vst.msk [vmem:[%s4 + $0x30] sm:$0xff] %vm2025, %v1899
    %2033 = vst.msk [vmem:[%s4 + $0x38] sm:$0xff] %vm2025, %v1902
    %2034 = vst.msk [vmem:[%s4 + $0x40] sm:$0xff] %vm2025, %v1907
    %2035 = vst.msk [vmem:[%s4 + $0x48] sm:$0xff] %vm2025, %v1910
    %2036 = vst.msk [vmem:[%s4 + $0x50] sm:$0xff] %vm2025, %v1915
    %2037 = vst.msk [vmem:[%s4 + $0x58] sm:$0xff] %vm2025, %v1918
    %2038 = vst.msk [vmem:[%s4 + $0x60] sm:$0xff] %vm2025, %v1923
    %2039 = vst.msk [vmem:[%s4 + $0x68] sm:$0xff] %vm2025, %v1926
    %2040 = vst.msk [vmem:[%s4 + $0x70] sm:$0xff] %vm2025, %v1931
    %2041 = vst.msk [vmem:[%s4 + $0x78] sm:$0xff] %vm2025, %v1934
    %2042 = vst.msk [vmem:[%s4 + $0x80] sm:$0xff] %vm2025, %v1939
    %2043 = vst.msk [vmem:[%s4 + $0x88] sm:$0xff] %vm2025, %v1942
    %2044 = vst.msk [vmem:[%s4 + $0x90] sm:$0xff] %vm2025, %v1947
    %2045 = vst.msk [vmem:[%s4 + $0x98] sm:$0xff] %vm2025, %v1950
    %2046 = vst.msk [vmem:[%s4 + $0xa0] sm:$0xff] %vm2025, %v1955
    %2047 = vst.msk [vmem:[%s4 + $0xa8] sm:$0xff] %vm2025, %v1958
    %2048 = vst.msk [vmem:[%s4 + $0xb0] sm:$0xff] %vm2025, %v1963
    %2049 = vst.msk [vmem:[%s4 + $0xb8] sm:$0xff] %vm2025, %v1966
    %2050 = vst.msk [vmem:[%s4 + $0xc0] sm:$0xff] %vm2025, %v1971
    %2051 = vst.msk [vmem:[%s4 + $0xc8] sm:$0xff] %vm2025, %v1974
    %2052 = vst.msk [vmem:[%s4 + $0xd0] sm:$0xff] %vm2025, %v1979
    %2053 = vst.msk [vmem:[%s4 + $0xd8] sm:$0xff] %vm2025, %v1982
    %2054 = vst.msk [vmem:[%s4 + $0xe0] sm:$0xff] %vm2025, %v1987
    %2055 = vst.msk [vmem:[%s4 + $0xe8] sm:$0xff] %vm2025, %v1990
    %2056 = vst.msk [vmem:[%s4 + $0xf0] sm:$0xff] %vm2025, %v1995
    %2057 = vst.msk [vmem:[%s4 + $0xf8] sm:$0xff] %vm2025, %v1998
    %2058 = vst.msk [vmem:[%s4 + $0x100] sm:$0xff] %vm2025, %v2003
    %2059 = vst.msk [vmem:[%s4 + $0x108] sm:$0xff] %vm2025, %v2006
    %2060 = vst.msk [vmem:[%s4 + $0x110] sm:$0xff] %vm2025, %v2011
    %2061 = vst.msk [vmem:[%s4 + $0x118] sm:$0xff] %vm2025, %v2014
    %2062 = vst.msk [vmem:[%s4 + $0x120] sm:$0xff] %vm2025, %v2019
    %2063 = vst.msk [vmem:[%s4 + $0x128] sm:$0xff] %vm2025, %v2022
    // Predicated region
    $region14: #{mlp_q_network.2} parent=1 // pred_check
      _
    $region15: #{mlp_q_network.2} parent=1 // pred_check_branch
      %2065 = sbr.rel (0) target = $region17
    $region16: #{mlp_q_network.2} parent=1 // pred_region
      _
    $region17: #{mlp_q_network.2} parent=1 // pred_fallthru
      _
    // Predicated region
    $region18: #{mlp_q_network.2} parent=1 // pred_check
      _
    $region19: #{mlp_q_network.2} parent=1 // pred_check_branch
      %2067 = sbr.rel (0) target = $region21
    $region20: #{mlp_q_network.2} parent=1 // pred_region
      _
    $region21: #{mlp_q_network.2} parent=1 // pred_fallthru
      _

</llo_original>
